<compile_context>
chip_gen: v6e
topology: v6e:2x2x1
jax: 0.10.0
libtpu: 0.0.40
codegen_flags: <defaults>
</compile_context>

<pallas_src>
import functools

import numpy as np
import jax
import jax.numpy as jnp
from jax.experimental import pallas as pl
from jax.experimental.pallas import tpu as pltpu


def _round_up(a: int, b: int) -> int:
    return -(-a // b) * b


def _cdiv(a: int, b: int) -> int:
    return -(-a // b)


def _tpu_hw():
    """Returns (vmem_capacity_bytes, tensorcores_per_chip) with safe fallbacks."""
    vmem_cap = 128 * 1024 * 1024
    try:
        vmem_cap = int(pltpu.get_tpu_info().vmem_capacity_bytes)
    except Exception:
        pass
    if vmem_cap <= 0:
        vmem_cap = 128 * 1024 * 1024
    cores = 1
    try:
        kind = jax.devices()[0].device_kind.lower()
        if "v7" in kind:
            cores = 2
    except Exception:
        pass
    return vmem_cap, cores


def _lane_metadata(d, num_freqs, include_input, log_sampling):
    """Host-side per-output-lane metadata, baked once per config.

    Returns:
      G:     (d, out_d) f32 with G[chan(k), k] = freq_scale(k) (1.0 on passthrough
             lanes), so `x @ G` replicates channels across output lanes *and*
             applies the frequency scale in a single MXU pass.
      phase: (1, out_d) f32, pi/2 on cos lanes, 0 elsewhere (cos(a) = sin(a + pi/2)).
      off, out_d
    """
    off = d if include_input else 0
    out_d = off + 2 * num_freqs * d
    k = np.arange(out_d)
    emb_k = np.maximum(k - off, 0)
    comp = emb_k // d                       # 0..2F-1, [sin, cos] interleaved per freq
    chan = (k % d).astype(np.int64)         # input channel feeding lane k
    is_pass = k < off
    is_cos = (~is_pass) & (comp % 2 == 1)
    if log_sampling:
        bands = 2.0 ** np.linspace(0.0, num_freqs - 1, num_freqs)
    else:
        bands = np.linspace(2.0 ** 0.0, 2.0 ** (num_freqs - 1), num_freqs)
    scale = np.where(is_pass, 1.0, bands[comp // 2]).astype(np.float32)
    G = np.zeros((d, out_d), np.float32)
    G[chan, k] = scale
    phase = np.where(is_cos, np.float32(np.pi / 2), np.float32(0.0)).astype(np.float32)
    return G, phase.reshape(1, out_d), off, out_d


def _pe_compute(x_ref, g_ref, phase_ref, w_ref, o_ref, off):
    x = x_ref[...].astype(jnp.float32)
    # Channel replication + frequency scaling on the (otherwise idle) MXU.
    # HIGHEST precision keeps full f32 mantissa; with one-hot power-of-two G this
    # reproduces x * freq exactly.
    arg = jnp.dot(x, g_ref[...],
                  precision=jax.lax.Precision.HIGHEST,
                  preferred_element_type=jnp.float32)
    # One transcendental per lane: cos(a) = sin(a + pi/2).
    emb = jnp.sin(arg + phase_ref[...])
    if w_ref is not None:
        emb = emb * w_ref[...]              # weights only touch the sin/cos lanes
    if off:
        lane = jax.lax.broadcasted_iota(jnp.int32, emb.shape, 1)
        res = jnp.where(lane < off, arg, emb)   # passthrough lanes carry x (scale 1)
    else:
        res = emb
    o_ref[...] = res.astype(o_ref.dtype)


def _pe_kernel(x_ref, g_ref, phase_ref, o_ref, *, off):
    _pe_compute(x_ref, g_ref, phase_ref, None, o_ref, off)


def _pe_kernel_w(x_ref, g_ref, phase_ref, w_ref, o_ref, *, off):
    _pe_compute(x_ref, g_ref, phase_ref, w_ref, o_ref, off)


def positional_encoding(inputs, *, num_freqs=8, include_input=True, log_sampling=True,
                        weights=None, tm=None, out_dtype=None):
    """JAX/Pallas equivalent of PositionalEncoding.forward -> (embedded, None).

    Pass out_dtype=jnp.bfloat16 when the downstream MLP consumes bf16: math stays
    f32, only the store is cast, halving the dominant output HBM traffic.
    """
    if num_freqs == 0:
        assert include_input
        return inputs, None

    d = inputs.shape[-1]
    g_np, phase_np, off, out_d = _lane_metadata(d, num_freqs, include_input, log_sampling)
    lead = inputs.shape[:-1]
    x2d = inputs.reshape(-1, d)             # metadata-only reshape
    n = x2d.shape[0]
    out_dtype = out_dtype or inputs.dtype

    # --- weights mode (torch: embedded = embedded * weights, pre-concat) ---------
    w_emb_len = 2 * num_freqs * d
    w_arr = None
    w_is_row = True
    if weights is not None:
        # TODO(synk): weights with more leading dims than `inputs` (output-rank-
        # changing broadcast) are not supported.
        w_arr = jnp.asarray(weights, jnp.float32)
        w_is_row = w_arr.ndim <= 1 and w_arr.size in (1, w_emb_len)

    # --- tile / VMEM budgeting (against *padded* block sizes) --------------------
    vmem_cap, cores = _tpu_hw()
    in_itemsize = jnp.dtype(inputs.dtype).itemsize
    out_itemsize = jnp.dtype(out_dtype).itemsize
    out_lanes = _round_up(out_d, 128)
    per_row = 128 * in_itemsize + out_lanes * out_itemsize     # lane-padded, per buffer
    if w_arr is not None and not w_is_row:
        per_row += out_lanes * 4
    tm_cap = 8192 if vmem_cap <= (64 << 20) else 16384         # v7x: 64 MiB/TC
    if tm is None:
        budget = vmem_cap // 4                                 # double-buffered blocks
        tm = max(8, min(tm_cap, (budget // (2 * per_row)) // 8 * 8))
    tm = max(8, min(_round_up(tm, 8), _round_up(n, 8)))

    nblocks = _cdiv(n, tm)
    if cores > 1 and n > 8 * cores:
        # Keep block count a multiple of the TensorCore count for megacore balance.
        nblocks = _round_up(nblocks, cores)
        tm = max(8, _round_up(_cdiv(n, nblocks), 8))
        nblocks = _cdiv(n, tm)

    vmem_usage = 2 * per_row * tm + (512 << 10)
    vmem_limit = int(min(max(vmem_usage + (8 << 20), 16 << 20), vmem_cap - (4 << 20)))

    g_mat = jnp.asarray(g_np)
    phase_row = jnp.asarray(phase_np)

    in_specs = [pl.BlockSpec((tm, d), lambda i: (i, 0)),
                pl.BlockSpec((d, out_d), lambda i: (0, 0)),
                pl.BlockSpec((1, out_d), lambda i: (0, 0))]
    operands = [x2d, g_mat, phase_row]
    kernel = functools.partial(_pe_kernel, off=off)

    if w_arr is not None:
        if w_is_row:
            w_emb = jnp.broadcast_to(jnp.ravel(w_arr), (w_emb_len,))
            w_op = jnp.concatenate([jnp.ones((off,), jnp.float32), w_emb]).reshape(1, out_d)
            in_specs.append(pl.BlockSpec((1, out_d), lambda i: (0, 0)))
        else:
            w_emb = jnp.broadcast_to(w_arr, lead + (w_emb_len,)).astype(jnp.float32)
            w_emb = w_emb.reshape(-1, w_emb_len)
            w_op = jnp.concatenate([jnp.ones((n, off), jnp.float32), w_emb], axis=-1)
            in_specs.append(pl.BlockSpec((tm, out_d), lambda i: (i, 0)))
        operands.append(w_op)
        kernel = functools.partial(_pe_kernel_w, off=off)

    out2d = pl.pallas_call(
        kernel,
        out_shape=jax.ShapeDtypeStruct((n, out_d), out_dtype),
        grid=(nblocks,),
        in_specs=in_specs,
        out_specs=pl.BlockSpec((tm, out_d), lambda i: (i, 0)),
        compiler_params=pltpu.CompilerParams(
            dimension_semantics=("parallel",),
            vmem_limit_bytes=vmem_limit),
    )(*operands)

    return out2d.reshape(lead + (out_d,)), None


def _reference(inputs, *, num_freqs=8, include_input=True, log_sampling=True):
    """Pure-JAX reference mirroring the PyTorch math (f32), for verification."""
    if log_sampling:
        freq_bands = 2.0 ** jnp.linspace(0.0, num_freqs - 1, num_freqs)
    else:
        freq_bands = jnp.linspace(2.0 ** 0.0, 2.0 ** (num_freqs - 1), num_freqs)
    x = inputs[..., None, :].astype(jnp.float32)             # [..., 1, D]
    fb = freq_bands.reshape((1,) * (x.ndim - 2) + (-1, 1))   # [..., F, 1]
    xb = x * fb                                              # [..., F, D]
    emb = jnp.stack([jnp.sin(xb), jnp.cos(xb)], axis=-2)     # [..., F, 2, D]
    emb = emb.reshape(emb.shape[:-3] + (-1,))                # [..., F*2*D]
    if include_input:
        emb = jnp.concatenate([inputs.astype(jnp.float32), emb], axis=-1)
    return emb


if __name__ == "__main__":
    key = jax.random.PRNGKey(0)
    B, N, D = 2, 64, 4
    x = jax.random.normal(key, (B, N, D), dtype=jnp.float32)

    # 1) Main config. cos lanes use sin(arg + pi/2); at |arg| up to ~2^7*|x| this
    #    differs from a direct cos by a few ULP of the argument -> loose atol.
    nf = 8
    out, aux = positional_encoding(x, num_freqs=nf, include_input=True)
    out = jax.block_until_ready(out)
    ref = _reference(x, num_freqs=nf, include_input=True)
    assert aux is None
    assert out.shape == (B, N, D * (1 + 2 * nf)), out.shape
    assert jnp.allclose(out.astype(jnp.float32), ref, atol=2e-4, rtol=1e-5), "mismatch (main)"

    # 2) Tight-tolerance check at small frequencies, include_input=False branch.
    out4, _ = positional_encoding(x, num_freqs=4, include_input=False)
    out4 = jax.block_until_ready(out4)
    ref4 = _reference(x, num_freqs=4, include_input=False)
    assert out4.shape == (B, N, D * 2 * 4), out4.shape
    assert jnp.allclose(out4.astype(jnp.float32), ref4, atol=2e-5, rtol=1e-5), "mismatch (nf=4)"

    # 3) Fused per-embedding-channel weights (scales the sin/cos slice only).
    w = jnp.full((D * 2 * nf,), 0.5, jnp.float32)
    out_w, _ = positional_encoding(x, num_freqs=nf, include_input=True, weights=w)
    out_w = jax.block_until_ready(out_w)
    ref_w = jnp.concatenate([ref[..., :D], ref[..., D:] * 0.5], axis=-1)
    assert jnp.allclose(out_w.astype(jnp.float32), ref_w, atol=2e-4, rtol=1e-5), "mismatch (row w)"

    # 4) Fully per-element weights, fused as a tiled operand (no post-hoc XLA pass).
    wf = jax.random.uniform(jax.random.PRNGKey(1), (B, N, D * 2 * nf), dtype=jnp.float32)
    out_wf, _ = positional_encoding(x, num_freqs=nf, include_input=True, weights=wf)
    out_wf = jax.block_until_ready(out_wf)
    ref_wf = jnp.concatenate([ref[..., :D], ref[..., D:] * wf], axis=-1)
    assert jnp.allclose(out_wf.astype(jnp.float32), ref_wf, atol=2e-4, rtol=1e-5), "mismatch (full w)"

    # 5) bf16 output (storage-only cast; math stays f32).
    out_bf, _ = positional_encoding(x, num_freqs=nf, include_input=True,
                                    out_dtype=jnp.bfloat16)
    out_bf = jax.block_until_ready(out_bf)
    assert out_bf.dtype == jnp.bfloat16
    assert jnp.allclose(out_bf.astype(jnp.float32), ref, atol=2e-2, rtol=0.0), "mismatch (bf16)"

    print("KERNEL_OK")
</pallas_src>

<mosaic_0001>
module attributes {stable_mosaic.version = 11 : i64} {
  func.func @_pe_kernel(%arg0: i32, %arg1: memref<128x4xf32, #tpu.memory_space<vmem>>, %arg2: memref<4x68xf32, #tpu.memory_space<vmem>>, %arg3: memref<1x68xf32, #tpu.memory_space<vmem>>, %arg4: memref<128x68xf32, #tpu.memory_space<vmem>>) attributes {dimension_semantics = [#tpu.dimension_semantics<parallel>], iteration_bounds = array<i64: 1>, scalar_prefetch = 0 : i64, scratch_operands = 0 : i64, tpu.core_type = #tpu.core_type<tc>, window_params = [{transform_indices = @transform_0, window_bounds = array<i64: 128, 4>}, {pipeline_mode = #tpu.pipeline_mode<synchronous>, transform_indices = @transform_1, window_bounds = array<i64: 4, 68>}, {pipeline_mode = #tpu.pipeline_mode<synchronous>, transform_indices = @transform_2, window_bounds = array<i64: 1, 68>}, {transform_indices = @transform_3, window_bounds = array<i64: 128, 68>}]} {
    %c0 = arith.constant 0 : index
    %c0_0 = arith.constant 0 : index
    %0 = vector.load %arg1[%c0, %c0_0] : memref<128x4xf32, #tpu.memory_space<vmem>>, vector<128x4xf32>
    %c0_1 = arith.constant 0 : index
    %c0_2 = arith.constant 0 : index
    %1 = vector.load %arg2[%c0_1, %c0_2] : memref<4x68xf32, #tpu.memory_space<vmem>>, vector<4x68xf32>
    %cst = arith.constant dense<0.000000e+00> : vector<128x68xf32>
    %2 = tpu.matmul %0, %1, %cst {dimension_numbers = #tpu.dot_dimension_numbers<[1], [0], [0], [1], [0, 0, 1, 1], [], []>, precision = #tpu.contract_precision<fp32>} : vector<128x4xf32>, vector<4x68xf32>, vector<128x68xf32> -> vector<128x68xf32>
    %c0_3 = arith.constant 0 : index
    %c0_4 = arith.constant 0 : index
    %3 = vector.load %arg3[%c0_3, %c0_4] : memref<1x68xf32, #tpu.memory_space<vmem>>, vector<1x68xf32>
    %4 = vector.broadcast %3 : vector<1x68xf32> to vector<128x68xf32>
    %5 = arith.addf %2, %4 : vector<128x68xf32>
    %6 = math.sin %5 : vector<128x68xf32>
    %7 = tpu.iota {dimensions = array<i32: 1>} : vector<128x68xi32>
    %c4_i32 = arith.constant 4 : i32
    %8 = vector.broadcast %c4_i32 : i32 to vector<128x68xi32>
    %9 = arith.cmpi slt, %7, %8 : vector<128x68xi32>
    %10 = arith.select %9, %2, %6 : vector<128x68xi1>, vector<128x68xf32>
    %c0_5 = arith.constant 0 : index
    %c0_6 = arith.constant 0 : index
    %11 = vector.load %arg4[%c0_5, %c0_6] : memref<128x68xf32, #tpu.memory_space<vmem>>, vector<128x68xf32>
    tpu.vector_store %arg4[%c0_5, %c0_6], %10 {strides = array<i32>} : memref<128x68xf32, #tpu.memory_space<vmem>>, vector<128x68xf32>,
    return
  }
  func.func @transform_0(%arg0: i32) -> (i32, i32) {
    %c0_i32 = arith.constant 0 : i32
    %c0_i32_0 = arith.constant 0 : i32
    return %arg0, %c0_i32 : i32, i32
  }
  func.func @transform_1(%arg0: i32) -> (i32, i32) {
    %c0_i32 = arith.constant 0 : i32
    %c0_i32_0 = arith.constant 0 : i32
    %c0_i32_1 = arith.constant 0 : i32
    return %c0_i32, %c0_i32_0 : i32, i32
  }
  func.func @transform_2(%arg0: i32) -> (i32, i32) {
    %c0_i32 = arith.constant 0 : i32
    %c0_i32_0 = arith.constant 0 : i32
    %c0_i32_1 = arith.constant 0 : i32
    return %c0_i32, %c0_i32_0 : i32, i32
  }
  func.func @transform_3(%arg0: i32) -> (i32, i32) {
    %c0_i32 = arith.constant 0 : i32
    %c0_i32_0 = arith.constant 0 : i32
    return %arg0, %c0_i32 : i32, i32
  }
}

</mosaic_0001>

<llo_original>
// kernel: tpu_custom_call.1
$region0: #{tpu_custom_call.1}
  #allocation0 [shape = 'u32[]', space=smem, size = 0x4, offset = 0x4, fixed_abs, tag = 'smem constant byte address 0x4 - core index']
  #allocation1 [shape = 'u32[144,128]{1,0:T(1,128)}', space=vmem, size = 0x12000, scoped, tag = 'internal scratch']
  %s0 = inlined_call_operand.vmem [shape: f32[128,4], index: 0, kind: input, shape index: {}]
  %s1 = inlined_call_operand.vmem [shape: f32[4,68], index: 1, kind: input, shape index: {}]
  %s2 = inlined_call_operand.vmem [shape: f32[1,68], index: 2, kind: input, shape index: {}]
  %s3 = inlined_call_operand.vmem [shape: f32[128,68], index: 3, kind: output, shape index: {}]
  %s4 = sld [smem:[#allocation0]]
  $region22: #{tpu_custom_call.1} parent=0
    _
  %s6 = ssub.s32 1, %s4
  %s7 = scalar_select 0, %s6, %s4
  // Predicated region
  $region2: #{tpu_custom_call.1} parent=0 // pred_check
    _
  $region3: #{tpu_custom_call.1} parent=0 // pred_check_branch
    %9 = sbr.rel (0) target = $region5
  $region4: #{tpu_custom_call.1} parent=0 // pred_region
    _
  $region5: #{tpu_custom_call.1} parent=0 // pred_fallthru
    _
  // Predicated region
  $region6: #{tpu_custom_call.1} parent=0 // pred_check
    _
  $region7: #{tpu_custom_call.1} parent=0 // pred_check_branch
    %11 = sbr.rel (0) target = $region9
  $region8: #{tpu_custom_call.1} parent=0 // pred_region
    _
  $region9: #{tpu_custom_call.1} parent=0 // pred_fallthru
    _
  // Predicated region
  $region10: #{tpu_custom_call.1} parent=0 // pred_check
    _
  $region11: #{tpu_custom_call.1} parent=0 // pred_check_branch
    %13 = sbr.rel (0) target = $region13
  $region12: #{tpu_custom_call.1} parent=0 // pred_region
    _
  $region13: #{tpu_custom_call.1} parent=0 // pred_fallthru
    _
  %v14 = vld [vmem:[%s0] sm:$0xff]
  %v15 = vld [vmem:[%s0 + $0x8] sm:$0xff]
  %v16 = vld [vmem:[%s0 + $0x10] sm:$0xff]
  %v17 = vld [vmem:[%s0 + $0x18] sm:$0xff]
  %v18 = vld [vmem:[%s0 + $0x20] sm:$0xff]
  %v19 = vld [vmem:[%s0 + $0x28] sm:$0xff]
  %v20 = vld [vmem:[%s0 + $0x30] sm:$0xff]
  %v21 = vld [vmem:[%s0 + $0x38] sm:$0xff]
  %v22 = vld [vmem:[%s0 + $0x40] sm:$0xff]
  %v23 = vld [vmem:[%s0 + $0x48] sm:$0xff]
  %v24 = vld [vmem:[%s0 + $0x50] sm:$0xff]
  %v25 = vld [vmem:[%s0 + $0x58] sm:$0xff]
  %v26 = vld [vmem:[%s0 + $0x60] sm:$0xff]
  %v27 = vld [vmem:[%s0 + $0x68] sm:$0xff]
  %v28 = vld [vmem:[%s0 + $0x70] sm:$0xff]
  %v29 = vld [vmem:[%s0 + $0x78] sm:$0xff]
  %v30 = vld [vmem:[%s1] sm:$0xf]
  %vm31 = vcmask 31744
  %v33 = vsel %vm31, %v14, 0
  %v36 = vsel %vm31, %v15, 0
  %v39 = vsel %vm31, %v16, 0
  %v42 = vsel %vm31, %v17, 0
  %v45 = vsel %vm31, %v18, 0
  %v48 = vsel %vm31, %v19, 0
  %v51 = vsel %vm31, %v20, 0
  %v54 = vsel %vm31, %v21, 0
  %v57 = vsel %vm31, %v22, 0
  %v60 = vsel %vm31, %v23, 0
  %v63 = vsel %vm31, %v24, 0
  %v66 = vsel %vm31, %v25, 0
  %v69 = vsel %vm31, %v26, 0
  %v72 = vsel %vm31, %v27, 0
  %v75 = vsel %vm31, %v28, 0
  %v78 = vsel %vm31, %v29, 0
  %vm80 = vcmask 1043456
  %v82 = vsel %vm80, %v30, 0
  %84 = vmatprep.subr.mxu0 0.0
  %85 = vmatpush1.msra.mxu0 0.0
  %86 = vmatprep.subr.mxu0 0.0
  %87 = vmatpush1.msra.mxu0 0.0
  %88 = vmatprep.subr.mxu0 0.0
  %89 = vmatpush1.msra.mxu0 0.0
  %90 = vmatprep.subr.mxu0 0.0
  %91 = vmatpush1.msra.mxu0 0.0
  %92 = vmatprep.subr.mxu0 0.0
  %93 = vmatpush1.msra.mxu0 0.0
  %94 = vmatprep.subr.mxu0 0.0
  %95 = vmatpush1.msra.mxu0 0.0
  %96 = vmatprep.subr.mxu0 0.0
  %97 = vmatpush1.msra.mxu0 0.0
  %98 = vmatprep.subr.mxu0 0.0
  %99 = vmatpush1.msra.mxu0 0.0
  %100 = vmatprep.subr.mxu0 0.0
  %101 = vmatpush1.msra.mxu0 0.0
  %102 = vmatprep.subr.mxu0 0.0
  %103 = vmatpush1.msra.mxu0 0.0
  %104 = vmatprep.subr.mxu0 0.0
  %105 = vmatpush1.msra.mxu0 0.0
  %106 = vmatprep.subr.mxu0 0.0
  %107 = vmatpush1.msra.mxu0 0.0
  %108 = vmatprep.subr.mxu0 0.0
  %109 = vmatpush1.msra.mxu0 0.0
  %110 = vmatprep.subr.mxu0 0.0
  %111 = vmatpush1.msra.mxu0 0.0
  %112 = vmatprep.subr.mxu0 0.0
  %113 = vmatpush1.msra.mxu0 0.0
  %114 = vmatprep.subr.mxu0 0.0
  %v115 = vand.u32 %v82, 4294901760
  %116 = vmatpush1.msra.mxu0 %v115
  %117 = vmatprep.subr.mxu0 0.0
  %118 = vmatpush2.msra.mxu0 0.0
  %119 = vmatprep.subr.mxu0 0.0
  %120 = vmatpush2.msra.mxu0 0.0
  %121 = vmatprep.subr.mxu0 0.0
  %122 = vmatpush2.msra.mxu0 0.0
  %123 = vmatprep.subr.mxu0 0.0
  %124 = vmatpush2.msra.mxu0 0.0
  %125 = vmatprep.subr.mxu0 0.0
  %126 = vmatpush2.msra.mxu0 0.0
  %127 = vmatprep.subr.mxu0 0.0
  %128 = vmatpush2.msra.mxu0 0.0
  %129 = vmatprep.subr.mxu0 0.0
  %130 = vmatpush2.msra.mxu0 0.0
  %131 = vmatprep.subr.mxu0 0.0
  %132 = vmatpush2.msra.mxu0 0.0
  %133 = vmatprep.subr.mxu0 0.0
  %134 = vmatpush2.msra.mxu0 0.0
  %135 = vmatprep.subr.mxu0 0.0
  %136 = vmatpush2.msra.mxu0 0.0
  %137 = vmatprep.subr.mxu0 0.0
  %138 = vmatpush2.msra.mxu0 0.0
  %139 = vmatprep.subr.mxu0 0.0
  %140 = vmatpush2.msra.mxu0 0.0
  %141 = vmatprep.subr.mxu0 0.0
  %142 = vmatpush2.msra.mxu0 0.0
  %143 = vmatprep.subr.mxu0 0.0
  %144 = vmatpush2.msra.mxu0 0.0
  %145 = vmatprep.subr.mxu0 0.0
  %146 = vmatpush2.msra.mxu0 0.0
  %147 = vmatprep.subr.mxu0 0.0
  %148 = vmatpush2.msra.mxu0 0.0
  %149 = vmatprep.mubr.f32.mxu0 0.0
  %v150 = vand.u32 %v33, 4294901760
  %v151 = vsub.f32 %v33, %v150
  %v152 = vand.u32 %v151, 4294901760
  %v153 = vsub.f32 %v151, %v152
  %v154 = vand.u32 %v153, 4294901760
  %155 = vmatmul.mubr.f32.gmra.mxu0 %v154
  %v156 = vpop.f32.mrf.mxu0
  %v157 = vadd.f32 0.0, %v156
  %v158 = vpop.f32.mrf.mxu0
  %159 = vmatprep.mubr.f32.mxu0 0.0
  %v160 = vand.u32 %v36, 4294901760
  %v161 = vsub.f32 %v36, %v160
  %v162 = vand.u32 %v161, 4294901760
  %v163 = vsub.f32 %v161, %v162
  %v164 = vand.u32 %v163, 4294901760
  %165 = vmatmul.mubr.f32.gmra.mxu0 %v164
  %v166 = vpop.f32.mrf.mxu0
  %v167 = vadd.f32 0.0, %v166
  %v168 = vpop.f32.mrf.mxu0
  %169 = vmatprep.mubr.f32.mxu0 0.0
  %v170 = vand.u32 %v39, 4294901760
  %v171 = vsub.f32 %v39, %v170
  %v172 = vand.u32 %v171, 4294901760
  %v173 = vsub.f32 %v171, %v172
  %v174 = vand.u32 %v173, 4294901760
  %175 = vmatmul.mubr.f32.gmra.mxu0 %v174
  %v176 = vpop.f32.mrf.mxu0
  %v177 = vadd.f32 0.0, %v176
  %v178 = vpop.f32.mrf.mxu0
  %179 = vmatprep.mubr.f32.mxu0 0.0
  %v180 = vand.u32 %v42, 4294901760
  %v181 = vsub.f32 %v42, %v180
  %v182 = vand.u32 %v181, 4294901760
  %v183 = vsub.f32 %v181, %v182
  %v184 = vand.u32 %v183, 4294901760
  %185 = vmatmul.mubr.f32.gmra.mxu0 %v184
  %v186 = vpop.f32.mrf.mxu0
  %v187 = vadd.f32 0.0, %v186
  %v188 = vpop.f32.mrf.mxu0
  %189 = vmatprep.mubr.f32.mxu0 0.0
  %v190 = vand.u32 %v45, 4294901760
  %v191 = vsub.f32 %v45, %v190
  %v192 = vand.u32 %v191, 4294901760
  %v193 = vsub.f32 %v191, %v192
  %v194 = vand.u32 %v193, 4294901760
  %195 = vmatmul.mubr.f32.gmra.mxu0 %v194
  %v196 = vpop.f32.mrf.mxu0
  %v197 = vadd.f32 0.0, %v196
  %v198 = vpop.f32.mrf.mxu0
  %199 = vmatprep.mubr.f32.mxu0 0.0
  %v200 = vand.u32 %v48, 4294901760
  %v201 = vsub.f32 %v48, %v200
  %v202 = vand.u32 %v201, 4294901760
  %v203 = vsub.f32 %v201, %v202
  %v204 = vand.u32 %v203, 4294901760
  %205 = vmatmul.mubr.f32.gmra.mxu0 %v204
  %v206 = vpop.f32.mrf.mxu0
  %v207 = vadd.f32 0.0, %v206
  %v208 = vpop.f32.mrf.mxu0
  %209 = vmatprep.mubr.f32.mxu0 0.0
  %v210 = vand.u32 %v51, 4294901760
  %v211 = vsub.f32 %v51, %v210
  %v212 = vand.u32 %v211, 4294901760
  %v213 = vsub.f32 %v211, %v212
  %v214 = vand.u32 %v213, 4294901760
  %215 = vmatmul.mubr.f32.gmra.mxu0 %v214
  %v216 = vpop.f32.mrf.mxu0
  %v217 = vadd.f32 0.0, %v216
  %v218 = vpop.f32.mrf.mxu0
  %219 = vmatprep.mubr.f32.mxu0 0.0
  %v220 = vand.u32 %v54, 4294901760
  %v221 = vsub.f32 %v54, %v220
  %v222 = vand.u32 %v221, 4294901760
  %v223 = vsub.f32 %v221, %v222
  %v224 = vand.u32 %v223, 4294901760
  %225 = vmatmul.mubr.f32.gmra.mxu0 %v224
  %v226 = vpop.f32.mrf.mxu0
  %v227 = vadd.f32 0.0, %v226
  %v228 = vpop.f32.mrf.mxu0
  %229 = vmatprep.mubr.f32.mxu0 0.0
  %v230 = vand.u32 %v57, 4294901760
  %v231 = vsub.f32 %v57, %v230
  %v232 = vand.u32 %v231, 4294901760
  %v233 = vsub.f32 %v231, %v232
  %v234 = vand.u32 %v233, 4294901760
  %235 = vmatmul.mubr.f32.gmra.mxu0 %v234
  %v236 = vpop.f32.mrf.mxu0
  %v237 = vadd.f32 0.0, %v236
  %v238 = vpop.f32.mrf.mxu0
  %239 = vmatprep.mubr.f32.mxu0 0.0
  %v240 = vand.u32 %v60, 4294901760
  %v241 = vsub.f32 %v60, %v240
  %v242 = vand.u32 %v241, 4294901760
  %v243 = vsub.f32 %v241, %v242
  %v244 = vand.u32 %v243, 4294901760
  %245 = vmatmul.mubr.f32.gmra.mxu0 %v244
  %v246 = vpop.f32.mrf.mxu0
  %v247 = vadd.f32 0.0, %v246
  %v248 = vpop.f32.mrf.mxu0
  %249 = vmatprep.mubr.f32.mxu0 0.0
  %v250 = vand.u32 %v63, 4294901760
  %v251 = vsub.f32 %v63, %v250
  %v252 = vand.u32 %v251, 4294901760
  %v253 = vsub.f32 %v251, %v252
  %v254 = vand.u32 %v253, 4294901760
  %255 = vmatmul.mubr.f32.gmra.mxu0 %v254
  %v256 = vpop.f32.mrf.mxu0
  %v257 = vadd.f32 0.0, %v256
  %v258 = vpop.f32.mrf.mxu0
  %259 = vmatprep.mubr.f32.mxu0 0.0
  %v260 = vand.u32 %v66, 4294901760
  %v261 = vsub.f32 %v66, %v260
  %v262 = vand.u32 %v261, 4294901760
  %v263 = vsub.f32 %v261, %v262
  %v264 = vand.u32 %v263, 4294901760
  %265 = vmatmul.mubr.f32.gmra.mxu0 %v264
  %v266 = vpop.f32.mrf.mxu0
  %v267 = vadd.f32 0.0, %v266
  %v268 = vpop.f32.mrf.mxu0
  %269 = vmatprep.mubr.f32.mxu0 0.0
  %v270 = vand.u32 %v69, 4294901760
  %v271 = vsub.f32 %v69, %v270
  %v272 = vand.u32 %v271, 4294901760
  %v273 = vsub.f32 %v271, %v272
  %v274 = vand.u32 %v273, 4294901760
  %275 = vmatmul.mubr.f32.gmra.mxu0 %v274
  %v276 = vpop.f32.mrf.mxu0
  %v277 = vadd.f32 0.0, %v276
  %v278 = vpop.f32.mrf.mxu0
  %279 = vmatprep.mubr.f32.mxu0 0.0
  %v280 = vand.u32 %v72, 4294901760
  %v281 = vsub.f32 %v72, %v280
  %v282 = vand.u32 %v281, 4294901760
  %v283 = vsub.f32 %v281, %v282
  %v284 = vand.u32 %v283, 4294901760
  %285 = vmatmul.mubr.f32.gmra.mxu0 %v284
  %v286 = vpop.f32.mrf.mxu0
  %v287 = vadd.f32 0.0, %v286
  %v288 = vpop.f32.mrf.mxu0
  %289 = vmatprep.mubr.f32.mxu0 0.0
  %v290 = vand.u32 %v75, 4294901760
  %v291 = vsub.f32 %v75, %v290
  %v292 = vand.u32 %v291, 4294901760
  %v293 = vsub.f32 %v291, %v292
  %v294 = vand.u32 %v293, 4294901760
  %295 = vmatmul.mubr.f32.gmra.mxu0 %v294
  %v296 = vpop.f32.mrf.mxu0
  %v297 = vadd.f32 0.0, %v296
  %v298 = vpop.f32.mrf.mxu0
  %299 = vmatprep.mubr.f32.mxu0 0.0
  %v300 = vand.u32 %v78, 4294901760
  %v301 = vsub.f32 %v78, %v300
  %v302 = vand.u32 %v301, 4294901760
  %v303 = vsub.f32 %v301, %v302
  %v304 = vand.u32 %v303, 4294901760
  %305 = vmatmul.mubr.f32.gmra.mxu0 %v304
  %v306 = vpop.f32.mrf.mxu0
  %v307 = vadd.f32 0.0, %v306
  %v308 = vpop.f32.mrf.mxu0
  %309 = vdwg.mxu0
  %310 = vmatprep.subr.mxu0 0.0
  %311 = vmatpush1.msra.mxu0 0.0
  %312 = vmatprep.subr.mxu0 0.0
  %313 = vmatpush1.msra.mxu0 0.0
  %314 = vmatprep.subr.mxu0 0.0
  %315 = vmatpush1.msra.mxu0 0.0
  %316 = vmatprep.subr.mxu0 0.0
  %317 = vmatpush1.msra.mxu0 0.0
  %318 = vmatprep.subr.mxu0 0.0
  %319 = vmatpush1.msra.mxu0 0.0
  %320 = vmatprep.subr.mxu0 0.0
  %321 = vmatpush1.msra.mxu0 0.0
  %322 = vmatprep.subr.mxu0 0.0
  %323 = vmatpush1.msra.mxu0 0.0
  %324 = vmatprep.subr.mxu0 0.0
  %325 = vmatpush1.msra.mxu0 0.0
  %326 = vmatprep.subr.mxu0 0.0
  %327 = vmatpush1.msra.mxu0 0.0
  %328 = vmatprep.subr.mxu0 0.0
  %329 = vmatpush1.msra.mxu0 0.0
  %330 = vmatprep.subr.mxu0 0.0
  %331 = vmatpush1.msra.mxu0 0.0
  %332 = vmatprep.subr.mxu0 0.0
  %333 = vmatpush1.msra.mxu0 0.0
  %334 = vmatprep.subr.mxu0 0.0
  %335 = vmatpush1.msra.mxu0 0.0
  %336 = vmatprep.subr.mxu0 0.0
  %337 = vmatpush1.msra.mxu0 0.0
  %338 = vmatprep.subr.mxu0 0.0
  %339 = vmatpush1.msra.mxu0 0.0
  %340 = vmatprep.subr.mxu0 0.0
  %v341 = vand.u32 %v82, 4294901760
  %v342 = vsub.f32 %v82, %v341
  %v343 = vand.u32 %v342, 4294901760
  %v344 = vsub.f32 %v342, %v343
  %v345 = vand.u32 %v344, 4294901760
  %346 = vmatpush1.msra.mxu0 %v345
  %347 = vmatprep.subr.mxu0 0.0
  %348 = vmatpush2.msra.mxu0 0.0
  %349 = vmatprep.subr.mxu0 0.0
  %350 = vmatpush2.msra.mxu0 0.0
  %351 = vmatprep.subr.mxu0 0.0
  %352 = vmatpush2.msra.mxu0 0.0
  %353 = vmatprep.subr.mxu0 0.0
  %354 = vmatpush2.msra.mxu0 0.0
  %355 = vmatprep.subr.mxu0 0.0
  %356 = vmatpush2.msra.mxu0 0.0
  %357 = vmatprep.subr.mxu0 0.0
  %358 = vmatpush2.msra.mxu0 0.0
  %359 = vmatprep.subr.mxu0 0.0
  %360 = vmatpush2.msra.mxu0 0.0
  %361 = vmatprep.subr.mxu0 0.0
  %362 = vmatpush2.msra.mxu0 0.0
  %363 = vmatprep.subr.mxu0 0.0
  %364 = vmatpush2.msra.mxu0 0.0
  %365 = vmatprep.subr.mxu0 0.0
  %366 = vmatpush2.msra.mxu0 0.0
  %367 = vmatprep.subr.mxu0 0.0
  %368 = vmatpush2.msra.mxu0 0.0
  %369 = vmatprep.subr.mxu0 0.0
  %370 = vmatpush2.msra.mxu0 0.0
  %371 = vmatprep.subr.mxu0 0.0
  %372 = vmatpush2.msra.mxu0 0.0
  %373 = vmatprep.subr.mxu0 0.0
  %374 = vmatpush2.msra.mxu0 0.0
  %375 = vmatprep.subr.mxu0 0.0
  %376 = vmatpush2.msra.mxu0 0.0
  %377 = vmatprep.subr.mxu0 0.0
  %378 = vmatpush2.msra.mxu0 0.0
  %379 = vmatprep.mubr.f32.mxu0 0.0
  %v380 = vand.u32 %v33, 4294901760
  %381 = vmatmul.mubr.f32.gmra.mxu0 %v380
  %v382 = vpop.f32.mrf.mxu0
  %v383 = vadd.f32 %v157, %v382
  %v384 = vpop.f32.mrf.mxu0
  %385 = vmatprep.mubr.f32.mxu0 0.0
  %v386 = vand.u32 %v36, 4294901760
  %387 = vmatmul.mubr.f32.gmra.mxu0 %v386
  %v388 = vpop.f32.mrf.mxu0
  %v389 = vadd.f32 %v167, %v388
  %v390 = vpop.f32.mrf.mxu0
  %391 = vmatprep.mubr.f32.mxu0 0.0
  %v392 = vand.u32 %v39, 4294901760
  %393 = vmatmul.mubr.f32.gmra.mxu0 %v392
  %v394 = vpop.f32.mrf.mxu0
  %v395 = vadd.f32 %v177, %v394
  %v396 = vpop.f32.mrf.mxu0
  %397 = vmatprep.mubr.f32.mxu0 0.0
  %v398 = vand.u32 %v42, 4294901760
  %399 = vmatmul.mubr.f32.gmra.mxu0 %v398
  %v400 = vpop.f32.mrf.mxu0
  %v401 = vadd.f32 %v187, %v400
  %v402 = vpop.f32.mrf.mxu0
  %403 = vmatprep.mubr.f32.mxu0 0.0
  %v404 = vand.u32 %v45, 4294901760
  %405 = vmatmul.mubr.f32.gmra.mxu0 %v404
  %v406 = vpop.f32.mrf.mxu0
  %v407 = vadd.f32 %v197, %v406
  %v408 = vpop.f32.mrf.mxu0
  %409 = vmatprep.mubr.f32.mxu0 0.0
  %v410 = vand.u32 %v48, 4294901760
  %411 = vmatmul.mubr.f32.gmra.mxu0 %v410
  %v412 = vpop.f32.mrf.mxu0
  %v413 = vadd.f32 %v207, %v412
  %v414 = vpop.f32.mrf.mxu0
  %415 = vmatprep.mubr.f32.mxu0 0.0
  %v416 = vand.u32 %v51, 4294901760
  %417 = vmatmul.mubr.f32.gmra.mxu0 %v416
  %v418 = vpop.f32.mrf.mxu0
  %v419 = vadd.f32 %v217, %v418
  %v420 = vpop.f32.mrf.mxu0
  %421 = vmatprep.mubr.f32.mxu0 0.0
  %v422 = vand.u32 %v54, 4294901760
  %423 = vmatmul.mubr.f32.gmra.mxu0 %v422
  %v424 = vpop.f32.mrf.mxu0
  %v425 = vadd.f32 %v227, %v424
  %v426 = vpop.f32.mrf.mxu0
  %427 = vmatprep.mubr.f32.mxu0 0.0
  %v428 = vand.u32 %v57, 4294901760
  %429 = vmatmul.mubr.f32.gmra.mxu0 %v428
  %v430 = vpop.f32.mrf.mxu0
  %v431 = vadd.f32 %v237, %v430
  %v432 = vpop.f32.mrf.mxu0
  %433 = vmatprep.mubr.f32.mxu0 0.0
  %v434 = vand.u32 %v60, 4294901760
  %435 = vmatmul.mubr.f32.gmra.mxu0 %v434
  %v436 = vpop.f32.mrf.mxu0
  %v437 = vadd.f32 %v247, %v436
  %v438 = vpop.f32.mrf.mxu0
  %439 = vmatprep.mubr.f32.mxu0 0.0
  %v440 = vand.u32 %v63, 4294901760
  %441 = vmatmul.mubr.f32.gmra.mxu0 %v440
  %v442 = vpop.f32.mrf.mxu0
  %v443 = vadd.f32 %v257, %v442
  %v444 = vpop.f32.mrf.mxu0
  %445 = vmatprep.mubr.f32.mxu0 0.0
  %v446 = vand.u32 %v66, 4294901760
  %447 = vmatmul.mubr.f32.gmra.mxu0 %v446
  %v448 = vpop.f32.mrf.mxu0
  %v449 = vadd.f32 %v267, %v448
  %v450 = vpop.f32.mrf.mxu0
  %451 = vmatprep.mubr.f32.mxu0 0.0
  %v452 = vand.u32 %v69, 4294901760
  %453 = vmatmul.mubr.f32.gmra.mxu0 %v452
  %v454 = vpop.f32.mrf.mxu0
  %v455 = vadd.f32 %v277, %v454
  %v456 = vpop.f32.mrf.mxu0
  %457 = vmatprep.mubr.f32.mxu0 0.0
  %v458 = vand.u32 %v72, 4294901760
  %459 = vmatmul.mubr.f32.gmra.mxu0 %v458
  %v460 = vpop.f32.mrf.mxu0
  %v461 = vadd.f32 %v287, %v460
  %v462 = vpop.f32.mrf.mxu0
  %463 = vmatprep.mubr.f32.mxu0 0.0
  %v464 = vand.u32 %v75, 4294901760
  %465 = vmatmul.mubr.f32.gmra.mxu0 %v464
  %v466 = vpop.f32.mrf.mxu0
  %v467 = vadd.f32 %v297, %v466
  %v468 = vpop.f32.mrf.mxu0
  %469 = vmatprep.mubr.f32.mxu0 0.0
  %v470 = vand.u32 %v78, 4294901760
  %471 = vmatmul.mubr.f32.gmra.mxu0 %v470
  %v472 = vpop.f32.mrf.mxu0
  %v473 = vadd.f32 %v307, %v472
  %v474 = vpop.f32.mrf.mxu0
  %475 = vdwg.mxu0
  %476 = vmatprep.subr.mxu0 0.0
  %477 = vmatpush1.msra.mxu0 0.0
  %478 = vmatprep.subr.mxu0 0.0
  %479 = vmatpush1.msra.mxu0 0.0
  %480 = vmatprep.subr.mxu0 0.0
  %481 = vmatpush1.msra.mxu0 0.0
  %482 = vmatprep.subr.mxu0 0.0
  %483 = vmatpush1.msra.mxu0 0.0
  %484 = vmatprep.subr.mxu0 0.0
  %485 = vmatpush1.msra.mxu0 0.0
  %486 = vmatprep.subr.mxu0 0.0
  %487 = vmatpush1.msra.mxu0 0.0
  %488 = vmatprep.subr.mxu0 0.0
  %489 = vmatpush1.msra.mxu0 0.0
  %490 = vmatprep.subr.mxu0 0.0
  %491 = vmatpush1.msra.mxu0 0.0
  %492 = vmatprep.subr.mxu0 0.0
  %493 = vmatpush1.msra.mxu0 0.0
  %494 = vmatprep.subr.mxu0 0.0
  %495 = vmatpush1.msra.mxu0 0.0
  %496 = vmatprep.subr.mxu0 0.0
  %497 = vmatpush1.msra.mxu0 0.0
  %498 = vmatprep.subr.mxu0 0.0
  %499 = vmatpush1.msra.mxu0 0.0
  %500 = vmatprep.subr.mxu0 0.0
  %501 = vmatpush1.msra.mxu0 0.0
  %502 = vmatprep.subr.mxu0 0.0
  %503 = vmatpush1.msra.mxu0 0.0
  %504 = vmatprep.subr.mxu0 0.0
  %505 = vmatpush1.msra.mxu0 0.0
  %506 = vmatprep.subr.mxu0 0.0
  %v507 = vand.u32 %v82, 4294901760
  %v508 = vsub.f32 %v82, %v507
  %509 = vmatpush1.msra.mxu0 %v508
  %510 = vmatprep.subr.mxu0 0.0
  %511 = vmatpush2.msra.mxu0 0.0
  %512 = vmatprep.subr.mxu0 0.0
  %513 = vmatpush2.msra.mxu0 0.0
  %514 = vmatprep.subr.mxu0 0.0
  %515 = vmatpush2.msra.mxu0 0.0
  %516 = vmatprep.subr.mxu0 0.0
  %517 = vmatpush2.msra.mxu0 0.0
  %518 = vmatprep.subr.mxu0 0.0
  %519 = vmatpush2.msra.mxu0 0.0
  %520 = vmatprep.subr.mxu0 0.0
  %521 = vmatpush2.msra.mxu0 0.0
  %522 = vmatprep.subr.mxu0 0.0
  %523 = vmatpush2.msra.mxu0 0.0
  %524 = vmatprep.subr.mxu0 0.0
  %525 = vmatpush2.msra.mxu0 0.0
  %526 = vmatprep.subr.mxu0 0.0
  %527 = vmatpush2.msra.mxu0 0.0
  %528 = vmatprep.subr.mxu0 0.0
  %529 = vmatpush2.msra.mxu0 0.0
  %530 = vmatprep.subr.mxu0 0.0
  %531 = vmatpush2.msra.mxu0 0.0
  %532 = vmatprep.subr.mxu0 0.0
  %533 = vmatpush2.msra.mxu0 0.0
  %534 = vmatprep.subr.mxu0 0.0
  %535 = vmatpush2.msra.mxu0 0.0
  %536 = vmatprep.subr.mxu0 0.0
  %537 = vmatpush2.msra.mxu0 0.0
  %538 = vmatprep.subr.mxu0 0.0
  %539 = vmatpush2.msra.mxu0 0.0
  %540 = vmatprep.subr.mxu0 0.0
  %541 = vmatpush2.msra.mxu0 0.0
  %542 = vmatprep.mubr.f32.mxu0 0.0
  %v543 = vand.u32 %v33, 4294901760
  %v544 = vsub.f32 %v33, %v543
  %545 = vmatmul.mubr.f32.gmra.mxu0 %v544
  %v546 = vpop.f32.mrf.mxu0
  %v547 = vadd.f32 %v383, %v546
  %v548 = vpop.f32.mrf.mxu0
  %549 = vmatprep.mubr.f32.mxu0 0.0
  %v550 = vand.u32 %v36, 4294901760
  %v551 = vsub.f32 %v36, %v550
  %552 = vmatmul.mubr.f32.gmra.mxu0 %v551
  %v553 = vpop.f32.mrf.mxu0
  %v554 = vadd.f32 %v389, %v553
  %v555 = vpop.f32.mrf.mxu0
  %556 = vmatprep.mubr.f32.mxu0 0.0
  %v557 = vand.u32 %v39, 4294901760
  %v558 = vsub.f32 %v39, %v557
  %559 = vmatmul.mubr.f32.gmra.mxu0 %v558
  %v560 = vpop.f32.mrf.mxu0
  %v561 = vadd.f32 %v395, %v560
  %v562 = vpop.f32.mrf.mxu0
  %563 = vmatprep.mubr.f32.mxu0 0.0
  %v564 = vand.u32 %v42, 4294901760
  %v565 = vsub.f32 %v42, %v564
  %566 = vmatmul.mubr.f32.gmra.mxu0 %v565
  %v567 = vpop.f32.mrf.mxu0
  %v568 = vadd.f32 %v401, %v567
  %v569 = vpop.f32.mrf.mxu0
  %570 = vmatprep.mubr.f32.mxu0 0.0
  %v571 = vand.u32 %v45, 4294901760
  %v572 = vsub.f32 %v45, %v571
  %573 = vmatmul.mubr.f32.gmra.mxu0 %v572
  %v574 = vpop.f32.mrf.mxu0
  %v575 = vadd.f32 %v407, %v574
  %v576 = vpop.f32.mrf.mxu0
  %577 = vmatprep.mubr.f32.mxu0 0.0
  %v578 = vand.u32 %v48, 4294901760
  %v579 = vsub.f32 %v48, %v578
  %580 = vmatmul.mubr.f32.gmra.mxu0 %v579
  %v581 = vpop.f32.mrf.mxu0
  %v582 = vadd.f32 %v413, %v581
  %v583 = vpop.f32.mrf.mxu0
  %584 = vmatprep.mubr.f32.mxu0 0.0
  %v585 = vand.u32 %v51, 4294901760
  %v586 = vsub.f32 %v51, %v585
  %587 = vmatmul.mubr.f32.gmra.mxu0 %v586
  %v588 = vpop.f32.mrf.mxu0
  %v589 = vadd.f32 %v419, %v588
  %v590 = vpop.f32.mrf.mxu0
  %591 = vmatprep.mubr.f32.mxu0 0.0
  %v592 = vand.u32 %v54, 4294901760
  %v593 = vsub.f32 %v54, %v592
  %594 = vmatmul.mubr.f32.gmra.mxu0 %v593
  %v595 = vpop.f32.mrf.mxu0
  %v596 = vadd.f32 %v425, %v595
  %v597 = vpop.f32.mrf.mxu0
  %598 = vmatprep.mubr.f32.mxu0 0.0
  %v599 = vand.u32 %v57, 4294901760
  %v600 = vsub.f32 %v57, %v599
  %601 = vmatmul.mubr.f32.gmra.mxu0 %v600
  %v602 = vpop.f32.mrf.mxu0
  %v603 = vadd.f32 %v431, %v602
  %v604 = vpop.f32.mrf.mxu0
  %605 = vmatprep.mubr.f32.mxu0 0.0
  %v606 = vand.u32 %v60, 4294901760
  %v607 = vsub.f32 %v60, %v606
  %608 = vmatmul.mubr.f32.gmra.mxu0 %v607
  %v609 = vpop.f32.mrf.mxu0
  %v610 = vadd.f32 %v437, %v609
  %v611 = vpop.f32.mrf.mxu0
  %612 = vmatprep.mubr.f32.mxu0 0.0
  %v613 = vand.u32 %v63, 4294901760
  %v614 = vsub.f32 %v63, %v613
  %615 = vmatmul.mubr.f32.gmra.mxu0 %v614
  %v616 = vpop.f32.mrf.mxu0
  %v617 = vadd.f32 %v443, %v616
  %v618 = vpop.f32.mrf.mxu0
  %619 = vmatprep.mubr.f32.mxu0 0.0
  %v620 = vand.u32 %v66, 4294901760
  %v621 = vsub.f32 %v66, %v620
  %622 = vmatmul.mubr.f32.gmra.mxu0 %v621
  %v623 = vpop.f32.mrf.mxu0
  %v624 = vadd.f32 %v449, %v623
  %v625 = vpop.f32.mrf.mxu0
  %626 = vmatprep.mubr.f32.mxu0 0.0
  %v627 = vand.u32 %v69, 4294901760
  %v628 = vsub.f32 %v69, %v627
  %629 = vmatmul.mubr.f32.gmra.mxu0 %v628
  %v630 = vpop.f32.mrf.mxu0
  %v631 = vadd.f32 %v455, %v630
  %v632 = vpop.f32.mrf.mxu0
  %633 = vmatprep.mubr.f32.mxu0 0.0
  %v634 = vand.u32 %v72, 4294901760
  %v635 = vsub.f32 %v72, %v634
  %636 = vmatmul.mubr.f32.gmra.mxu0 %v635
  %v637 = vpop.f32.mrf.mxu0
  %v638 = vadd.f32 %v461, %v637
  %v639 = vpop.f32.mrf.mxu0
  %640 = vmatprep.mubr.f32.mxu0 0.0
  %v641 = vand.u32 %v75, 4294901760
  %v642 = vsub.f32 %v75, %v641
  %643 = vmatmul.mubr.f32.gmra.mxu0 %v642
  %v644 = vpop.f32.mrf.mxu0
  %v645 = vadd.f32 %v467, %v644
  %v646 = vpop.f32.mrf.mxu0
  %647 = vmatprep.mubr.f32.mxu0 0.0
  %v648 = vand.u32 %v78, 4294901760
  %v649 = vsub.f32 %v78, %v648
  %650 = vmatmul.mubr.f32.gmra.mxu0 %v649
  %v651 = vpop.f32.mrf.mxu0
  %v652 = vadd.f32 %v473, %v651
  %v653 = vpop.f32.mrf.mxu0
  %654 = vdwg.mxu0
  %655 = vmatprep.subr.mxu0 0.0
  %656 = vmatpush1.msra.mxu0 0.0
  %657 = vmatprep.subr.mxu0 0.0
  %658 = vmatpush1.msra.mxu0 0.0
  %659 = vmatprep.subr.mxu0 0.0
  %660 = vmatpush1.msra.mxu0 0.0
  %661 = vmatprep.subr.mxu0 0.0
  %662 = vmatpush1.msra.mxu0 0.0
  %663 = vmatprep.subr.mxu0 0.0
  %664 = vmatpush1.msra.mxu0 0.0
  %665 = vmatprep.subr.mxu0 0.0
  %666 = vmatpush1.msra.mxu0 0.0
  %667 = vmatprep.subr.mxu0 0.0
  %668 = vmatpush1.msra.mxu0 0.0
  %669 = vmatprep.subr.mxu0 0.0
  %670 = vmatpush1.msra.mxu0 0.0
  %671 = vmatprep.subr.mxu0 0.0
  %672 = vmatpush1.msra.mxu0 0.0
  %673 = vmatprep.subr.mxu0 0.0
  %674 = vmatpush1.msra.mxu0 0.0
  %675 = vmatprep.subr.mxu0 0.0
  %676 = vmatpush1.msra.mxu0 0.0
  %677 = vmatprep.subr.mxu0 0.0
  %678 = vmatpush1.msra.mxu0 0.0
  %679 = vmatprep.subr.mxu0 0.0
  %680 = vmatpush1.msra.mxu0 0.0
  %681 = vmatprep.subr.mxu0 0.0
  %682 = vmatpush1.msra.mxu0 0.0
  %683 = vmatprep.subr.mxu0 0.0
  %684 = vmatpush1.msra.mxu0 0.0
  %685 = vmatprep.subr.mxu0 0.0
  %v686 = vand.u32 %v82, 4294901760
  %687 = vmatpush1.msra.mxu0 %v686
  %688 = vmatprep.subr.mxu0 0.0
  %689 = vmatpush2.msra.mxu0 0.0
  %690 = vmatprep.subr.mxu0 0.0
  %691 = vmatpush2.msra.mxu0 0.0
  %692 = vmatprep.subr.mxu0 0.0
  %693 = vmatpush2.msra.mxu0 0.0
  %694 = vmatprep.subr.mxu0 0.0
  %695 = vmatpush2.msra.mxu0 0.0
  %696 = vmatprep.subr.mxu0 0.0
  %697 = vmatpush2.msra.mxu0 0.0
  %698 = vmatprep.subr.mxu0 0.0
  %699 = vmatpush2.msra.mxu0 0.0
  %700 = vmatprep.subr.mxu0 0.0
  %701 = vmatpush2.msra.mxu0 0.0
  %702 = vmatprep.subr.mxu0 0.0
  %703 = vmatpush2.msra.mxu0 0.0
  %704 = vmatprep.subr.mxu0 0.0
  %705 = vmatpush2.msra.mxu0 0.0
  %706 = vmatprep.subr.mxu0 0.0
  %707 = vmatpush2.msra.mxu0 0.0
  %708 = vmatprep.subr.mxu0 0.0
  %709 = vmatpush2.msra.mxu0 0.0
  %710 = vmatprep.subr.mxu0 0.0
  %711 = vmatpush2.msra.mxu0 0.0
  %712 = vmatprep.subr.mxu0 0.0
  %713 = vmatpush2.msra.mxu0 0.0
  %714 = vmatprep.subr.mxu0 0.0
  %715 = vmatpush2.msra.mxu0 0.0
  %716 = vmatprep.subr.mxu0 0.0
  %717 = vmatpush2.msra.mxu0 0.0
  %718 = vmatprep.subr.mxu0 0.0
  %719 = vmatpush2.msra.mxu0 0.0
  %720 = vmatprep.mubr.f32.mxu0 0.0
  %v721 = vand.u32 %v33, 4294901760
  %v722 = vsub.f32 %v33, %v721
  %v723 = vand.u32 %v722, 4294901760
  %724 = vmatmul.mubr.f32.gmra.mxu0 %v723
  %v725 = vpop.f32.mrf.mxu0
  %v726 = vadd.f32 %v547, %v725
  %v727 = vpop.f32.mrf.mxu0
  %728 = vmatprep.mubr.f32.mxu0 0.0
  %v729 = vand.u32 %v36, 4294901760
  %v730 = vsub.f32 %v36, %v729
  %v731 = vand.u32 %v730, 4294901760
  %732 = vmatmul.mubr.f32.gmra.mxu0 %v731
  %v733 = vpop.f32.mrf.mxu0
  %v734 = vadd.f32 %v554, %v733
  %v735 = vpop.f32.mrf.mxu0
  %736 = vmatprep.mubr.f32.mxu0 0.0
  %v737 = vand.u32 %v39, 4294901760
  %v738 = vsub.f32 %v39, %v737
  %v739 = vand.u32 %v738, 4294901760
  %740 = vmatmul.mubr.f32.gmra.mxu0 %v739
  %v741 = vpop.f32.mrf.mxu0
  %v742 = vadd.f32 %v561, %v741
  %v743 = vpop.f32.mrf.mxu0
  %744 = vmatprep.mubr.f32.mxu0 0.0
  %v745 = vand.u32 %v42, 4294901760
  %v746 = vsub.f32 %v42, %v745
  %v747 = vand.u32 %v746, 4294901760
  %748 = vmatmul.mubr.f32.gmra.mxu0 %v747
  %v749 = vpop.f32.mrf.mxu0
  %v750 = vadd.f32 %v568, %v749
  %v751 = vpop.f32.mrf.mxu0
  %752 = vmatprep.mubr.f32.mxu0 0.0
  %v753 = vand.u32 %v45, 4294901760
  %v754 = vsub.f32 %v45, %v753
  %v755 = vand.u32 %v754, 4294901760
  %756 = vmatmul.mubr.f32.gmra.mxu0 %v755
  %v757 = vpop.f32.mrf.mxu0
  %v758 = vadd.f32 %v575, %v757
  %v759 = vpop.f32.mrf.mxu0
  %760 = vmatprep.mubr.f32.mxu0 0.0
  %v761 = vand.u32 %v48, 4294901760
  %v762 = vsub.f32 %v48, %v761
  %v763 = vand.u32 %v762, 4294901760
  %764 = vmatmul.mubr.f32.gmra.mxu0 %v763
  %v765 = vpop.f32.mrf.mxu0
  %v766 = vadd.f32 %v582, %v765
  %v767 = vpop.f32.mrf.mxu0
  %768 = vmatprep.mubr.f32.mxu0 0.0
  %v769 = vand.u32 %v51, 4294901760
  %v770 = vsub.f32 %v51, %v769
  %v771 = vand.u32 %v770, 4294901760
  %772 = vmatmul.mubr.f32.gmra.mxu0 %v771
  %v773 = vpop.f32.mrf.mxu0
  %v774 = vadd.f32 %v589, %v773
  %v775 = vpop.f32.mrf.mxu0
  %776 = vmatprep.mubr.f32.mxu0 0.0
  %v777 = vand.u32 %v54, 4294901760
  %v778 = vsub.f32 %v54, %v777
  %v779 = vand.u32 %v778, 4294901760
  %780 = vmatmul.mubr.f32.gmra.mxu0 %v779
  %v781 = vpop.f32.mrf.mxu0
  %v782 = vadd.f32 %v596, %v781
  %v783 = vpop.f32.mrf.mxu0
  %784 = vmatprep.mubr.f32.mxu0 0.0
  %v785 = vand.u32 %v57, 4294901760
  %v786 = vsub.f32 %v57, %v785
  %v787 = vand.u32 %v786, 4294901760
  %788 = vmatmul.mubr.f32.gmra.mxu0 %v787
  %v789 = vpop.f32.mrf.mxu0
  %v790 = vadd.f32 %v603, %v789
  %v791 = vpop.f32.mrf.mxu0
  %792 = vmatprep.mubr.f32.mxu0 0.0
  %v793 = vand.u32 %v60, 4294901760
  %v794 = vsub.f32 %v60, %v793
  %v795 = vand.u32 %v794, 4294901760
  %796 = vmatmul.mubr.f32.gmra.mxu0 %v795
  %v797 = vpop.f32.mrf.mxu0
  %v798 = vadd.f32 %v610, %v797
  %v799 = vpop.f32.mrf.mxu0
  %800 = vmatprep.mubr.f32.mxu0 0.0
  %v801 = vand.u32 %v63, 4294901760
  %v802 = vsub.f32 %v63, %v801
  %v803 = vand.u32 %v802, 4294901760
  %804 = vmatmul.mubr.f32.gmra.mxu0 %v803
  %v805 = vpop.f32.mrf.mxu0
  %v806 = vadd.f32 %v617, %v805
  %v807 = vpop.f32.mrf.mxu0
  %808 = vmatprep.mubr.f32.mxu0 0.0
  %v809 = vand.u32 %v66, 4294901760
  %v810 = vsub.f32 %v66, %v809
  %v811 = vand.u32 %v810, 4294901760
  %812 = vmatmul.mubr.f32.gmra.mxu0 %v811
  %v813 = vpop.f32.mrf.mxu0
  %v814 = vadd.f32 %v624, %v813
  %v815 = vpop.f32.mrf.mxu0
  %816 = vmatprep.mubr.f32.mxu0 0.0
  %v817 = vand.u32 %v69, 4294901760
  %v818 = vsub.f32 %v69, %v817
  %v819 = vand.u32 %v818, 4294901760
  %820 = vmatmul.mubr.f32.gmra.mxu0 %v819
  %v821 = vpop.f32.mrf.mxu0
  %v822 = vadd.f32 %v631, %v821
  %v823 = vpop.f32.mrf.mxu0
  %824 = vmatprep.mubr.f32.mxu0 0.0
  %v825 = vand.u32 %v72, 4294901760
  %v826 = vsub.f32 %v72, %v825
  %v827 = vand.u32 %v826, 4294901760
  %828 = vmatmul.mubr.f32.gmra.mxu0 %v827
  %v829 = vpop.f32.mrf.mxu0
  %v830 = vadd.f32 %v638, %v829
  %v831 = vpop.f32.mrf.mxu0
  %832 = vmatprep.mubr.f32.mxu0 0.0
  %v833 = vand.u32 %v75, 4294901760
  %v834 = vsub.f32 %v75, %v833
  %v835 = vand.u32 %v834, 4294901760
  %836 = vmatmul.mubr.f32.gmra.mxu0 %v835
  %v837 = vpop.f32.mrf.mxu0
  %v838 = vadd.f32 %v645, %v837
  %v839 = vpop.f32.mrf.mxu0
  %840 = vmatprep.mubr.f32.mxu0 0.0
  %v841 = vand.u32 %v78, 4294901760
  %v842 = vsub.f32 %v78, %v841
  %v843 = vand.u32 %v842, 4294901760
  %844 = vmatmul.mubr.f32.gmra.mxu0 %v843
  %v845 = vpop.f32.mrf.mxu0
  %v846 = vadd.f32 %v652, %v845
  %v847 = vpop.f32.mrf.mxu0
  %848 = vdwg.mxu0
  %849 = vmatprep.subr.mxu0 0.0
  %850 = vmatpush1.msra.mxu0 0.0
  %851 = vmatprep.subr.mxu0 0.0
  %852 = vmatpush1.msra.mxu0 0.0
  %853 = vmatprep.subr.mxu0 0.0
  %854 = vmatpush1.msra.mxu0 0.0
  %855 = vmatprep.subr.mxu0 0.0
  %856 = vmatpush1.msra.mxu0 0.0
  %857 = vmatprep.subr.mxu0 0.0
  %858 = vmatpush1.msra.mxu0 0.0
  %859 = vmatprep.subr.mxu0 0.0
  %860 = vmatpush1.msra.mxu0 0.0
  %861 = vmatprep.subr.mxu0 0.0
  %862 = vmatpush1.msra.mxu0 0.0
  %863 = vmatprep.subr.mxu0 0.0
  %864 = vmatpush1.msra.mxu0 0.0
  %865 = vmatprep.subr.mxu0 0.0
  %866 = vmatpush1.msra.mxu0 0.0
  %867 = vmatprep.subr.mxu0 0.0
  %868 = vmatpush1.msra.mxu0 0.0
  %869 = vmatprep.subr.mxu0 0.0
  %870 = vmatpush1.msra.mxu0 0.0
  %871 = vmatprep.subr.mxu0 0.0
  %872 = vmatpush1.msra.mxu0 0.0
  %873 = vmatprep.subr.mxu0 0.0
  %874 = vmatpush1.msra.mxu0 0.0
  %875 = vmatprep.subr.mxu0 0.0
  %876 = vmatpush1.msra.mxu0 0.0
  %877 = vmatprep.subr.mxu0 0.0
  %878 = vmatpush1.msra.mxu0 0.0
  %879 = vmatprep.subr.mxu0 0.0
  %v880 = vand.u32 %v82, 4294901760
  %v881 = vsub.f32 %v82, %v880
  %v882 = vand.u32 %v881, 4294901760
  %883 = vmatpush1.msra.mxu0 %v882
  %884 = vmatprep.subr.mxu0 0.0
  %885 = vmatpush2.msra.mxu0 0.0
  %886 = vmatprep.subr.mxu0 0.0
  %887 = vmatpush2.msra.mxu0 0.0
  %888 = vmatprep.subr.mxu0 0.0
  %889 = vmatpush2.msra.mxu0 0.0
  %890 = vmatprep.subr.mxu0 0.0
  %891 = vmatpush2.msra.mxu0 0.0
  %892 = vmatprep.subr.mxu0 0.0
  %893 = vmatpush2.msra.mxu0 0.0
  %894 = vmatprep.subr.mxu0 0.0
  %895 = vmatpush2.msra.mxu0 0.0
  %896 = vmatprep.subr.mxu0 0.0
  %897 = vmatpush2.msra.mxu0 0.0
  %898 = vmatprep.subr.mxu0 0.0
  %899 = vmatpush2.msra.mxu0 0.0
  %900 = vmatprep.subr.mxu0 0.0
  %901 = vmatpush2.msra.mxu0 0.0
  %902 = vmatprep.subr.mxu0 0.0
  %903 = vmatpush2.msra.mxu0 0.0
  %904 = vmatprep.subr.mxu0 0.0
  %905 = vmatpush2.msra.mxu0 0.0
  %906 = vmatprep.subr.mxu0 0.0
  %907 = vmatpush2.msra.mxu0 0.0
  %908 = vmatprep.subr.mxu0 0.0
  %909 = vmatpush2.msra.mxu0 0.0
  %910 = vmatprep.subr.mxu0 0.0
  %911 = vmatpush2.msra.mxu0 0.0
  %912 = vmatprep.subr.mxu0 0.0
  %913 = vmatpush2.msra.mxu0 0.0
  %914 = vmatprep.subr.mxu0 0.0
  %915 = vmatpush2.msra.mxu0 0.0
  %916 = vmatprep.mubr.f32.mxu0 0.0
  %v917 = vand.u32 %v33, 4294901760
  %918 = vmatmul.mubr.f32.gmra.mxu0 %v917
  %v919 = vpop.f32.mrf.mxu0
  %v920 = vadd.f32 %v726, %v919
  %v921 = vpop.f32.mrf.mxu0
  %922 = vmatprep.mubr.f32.mxu0 0.0
  %v923 = vand.u32 %v36, 4294901760
  %924 = vmatmul.mubr.f32.gmra.mxu0 %v923
  %v925 = vpop.f32.mrf.mxu0
  %v926 = vadd.f32 %v734, %v925
  %v927 = vpop.f32.mrf.mxu0
  %928 = vmatprep.mubr.f32.mxu0 0.0
  %v929 = vand.u32 %v39, 4294901760
  %930 = vmatmul.mubr.f32.gmra.mxu0 %v929
  %v931 = vpop.f32.mrf.mxu0
  %v932 = vadd.f32 %v742, %v931
  %v933 = vpop.f32.mrf.mxu0
  %934 = vmatprep.mubr.f32.mxu0 0.0
  %v935 = vand.u32 %v42, 4294901760
  %936 = vmatmul.mubr.f32.gmra.mxu0 %v935
  %v937 = vpop.f32.mrf.mxu0
  %v938 = vadd.f32 %v750, %v937
  %v939 = vpop.f32.mrf.mxu0
  %940 = vmatprep.mubr.f32.mxu0 0.0
  %v941 = vand.u32 %v45, 4294901760
  %942 = vmatmul.mubr.f32.gmra.mxu0 %v941
  %v943 = vpop.f32.mrf.mxu0
  %v944 = vadd.f32 %v758, %v943
  %v945 = vpop.f32.mrf.mxu0
  %946 = vmatprep.mubr.f32.mxu0 0.0
  %v947 = vand.u32 %v48, 4294901760
  %948 = vmatmul.mubr.f32.gmra.mxu0 %v947
  %v949 = vpop.f32.mrf.mxu0
  %v950 = vadd.f32 %v766, %v949
  %v951 = vpop.f32.mrf.mxu0
  %952 = vmatprep.mubr.f32.mxu0 0.0
  %v953 = vand.u32 %v51, 4294901760
  %954 = vmatmul.mubr.f32.gmra.mxu0 %v953
  %v955 = vpop.f32.mrf.mxu0
  %v956 = vadd.f32 %v774, %v955
  %v957 = vpop.f32.mrf.mxu0
  %958 = vmatprep.mubr.f32.mxu0 0.0
  %v959 = vand.u32 %v54, 4294901760
  %960 = vmatmul.mubr.f32.gmra.mxu0 %v959
  %v961 = vpop.f32.mrf.mxu0
  %v962 = vadd.f32 %v782, %v961
  %v963 = vpop.f32.mrf.mxu0
  %964 = vmatprep.mubr.f32.mxu0 0.0
  %v965 = vand.u32 %v57, 4294901760
  %966 = vmatmul.mubr.f32.gmra.mxu0 %v965
  %v967 = vpop.f32.mrf.mxu0
  %v968 = vadd.f32 %v790, %v967
  %v969 = vpop.f32.mrf.mxu0
  %970 = vmatprep.mubr.f32.mxu0 0.0
  %v971 = vand.u32 %v60, 4294901760
  %972 = vmatmul.mubr.f32.gmra.mxu0 %v971
  %v973 = vpop.f32.mrf.mxu0
  %v974 = vadd.f32 %v798, %v973
  %v975 = vpop.f32.mrf.mxu0
  %976 = vmatprep.mubr.f32.mxu0 0.0
  %v977 = vand.u32 %v63, 4294901760
  %978 = vmatmul.mubr.f32.gmra.mxu0 %v977
  %v979 = vpop.f32.mrf.mxu0
  %v980 = vadd.f32 %v806, %v979
  %v981 = vpop.f32.mrf.mxu0
  %982 = vmatprep.mubr.f32.mxu0 0.0
  %v983 = vand.u32 %v66, 4294901760
  %984 = vmatmul.mubr.f32.gmra.mxu0 %v983
  %v985 = vpop.f32.mrf.mxu0
  %v986 = vadd.f32 %v814, %v985
  %v987 = vpop.f32.mrf.mxu0
  %988 = vmatprep.mubr.f32.mxu0 0.0
  %v989 = vand.u32 %v69, 4294901760
  %990 = vmatmul.mubr.f32.gmra.mxu0 %v989
  %v991 = vpop.f32.mrf.mxu0
  %v992 = vadd.f32 %v822, %v991
  %v993 = vpop.f32.mrf.mxu0
  %994 = vmatprep.mubr.f32.mxu0 0.0
  %v995 = vand.u32 %v72, 4294901760
  %996 = vmatmul.mubr.f32.gmra.mxu0 %v995
  %v997 = vpop.f32.mrf.mxu0
  %v998 = vadd.f32 %v830, %v997
  %v999 = vpop.f32.mrf.mxu0
  %1000 = vmatprep.mubr.f32.mxu0 0.0
  %v1001 = vand.u32 %v75, 4294901760
  %1002 = vmatmul.mubr.f32.gmra.mxu0 %v1001
  %v1003 = vpop.f32.mrf.mxu0
  %v1004 = vadd.f32 %v838, %v1003
  %v1005 = vpop.f32.mrf.mxu0
  %1006 = vmatprep.mubr.f32.mxu0 0.0
  %v1007 = vand.u32 %v78, 4294901760
  %1008 = vmatmul.mubr.f32.gmra.mxu0 %v1007
  %v1009 = vpop.f32.mrf.mxu0
  %v1010 = vadd.f32 %v846, %v1009
  %v1011 = vpop.f32.mrf.mxu0
  %1012 = vdwg.mxu0
  %1013 = vmatprep.subr.mxu0 0.0
  %1014 = vmatpush1.msra.mxu0 0.0
  %1015 = vmatprep.subr.mxu0 0.0
  %1016 = vmatpush1.msra.mxu0 0.0
  %1017 = vmatprep.subr.mxu0 0.0
  %1018 = vmatpush1.msra.mxu0 0.0
  %1019 = vmatprep.subr.mxu0 0.0
  %1020 = vmatpush1.msra.mxu0 0.0
  %1021 = vmatprep.subr.mxu0 0.0
  %1022 = vmatpush1.msra.mxu0 0.0
  %1023 = vmatprep.subr.mxu0 0.0
  %1024 = vmatpush1.msra.mxu0 0.0
  %1025 = vmatprep.subr.mxu0 0.0
  %1026 = vmatpush1.msra.mxu0 0.0
  %1027 = vmatprep.subr.mxu0 0.0
  %1028 = vmatpush1.msra.mxu0 0.0
  %1029 = vmatprep.subr.mxu0 0.0
  %1030 = vmatpush1.msra.mxu0 0.0
  %1031 = vmatprep.subr.mxu0 0.0
  %1032 = vmatpush1.msra.mxu0 0.0
  %1033 = vmatprep.subr.mxu0 0.0
  %1034 = vmatpush1.msra.mxu0 0.0
  %1035 = vmatprep.subr.mxu0 0.0
  %1036 = vmatpush1.msra.mxu0 0.0
  %1037 = vmatprep.subr.mxu0 0.0
  %1038 = vmatpush1.msra.mxu0 0.0
  %1039 = vmatprep.subr.mxu0 0.0
  %1040 = vmatpush1.msra.mxu0 0.0
  %1041 = vmatprep.subr.mxu0 0.0
  %1042 = vmatpush1.msra.mxu0 0.0
  %1043 = vmatprep.subr.mxu0 0.0
  %v1044 = vand.u32 %v82, 4294901760
  %1045 = vmatpush1.msra.mxu0 %v1044
  %1046 = vmatprep.subr.mxu0 0.0
  %1047 = vmatpush2.msra.mxu0 0.0
  %1048 = vmatprep.subr.mxu0 0.0
  %1049 = vmatpush2.msra.mxu0 0.0
  %1050 = vmatprep.subr.mxu0 0.0
  %1051 = vmatpush2.msra.mxu0 0.0
  %1052 = vmatprep.subr.mxu0 0.0
  %1053 = vmatpush2.msra.mxu0 0.0
  %1054 = vmatprep.subr.mxu0 0.0
  %1055 = vmatpush2.msra.mxu0 0.0
  %1056 = vmatprep.subr.mxu0 0.0
  %1057 = vmatpush2.msra.mxu0 0.0
  %1058 = vmatprep.subr.mxu0 0.0
  %1059 = vmatpush2.msra.mxu0 0.0
  %1060 = vmatprep.subr.mxu0 0.0
  %1061 = vmatpush2.msra.mxu0 0.0
  %1062 = vmatprep.subr.mxu0 0.0
  %1063 = vmatpush2.msra.mxu0 0.0
  %1064 = vmatprep.subr.mxu0 0.0
  %1065 = vmatpush2.msra.mxu0 0.0
  %1066 = vmatprep.subr.mxu0 0.0
  %1067 = vmatpush2.msra.mxu0 0.0
  %1068 = vmatprep.subr.mxu0 0.0
  %1069 = vmatpush2.msra.mxu0 0.0
  %1070 = vmatprep.subr.mxu0 0.0
  %1071 = vmatpush2.msra.mxu0 0.0
  %1072 = vmatprep.subr.mxu0 0.0
  %1073 = vmatpush2.msra.mxu0 0.0
  %1074 = vmatprep.subr.mxu0 0.0
  %1075 = vmatpush2.msra.mxu0 0.0
  %1076 = vmatprep.subr.mxu0 0.0
  %1077 = vmatpush2.msra.mxu0 0.0
  %1078 = vmatprep.mubr.f32.mxu0 0.0
  %v1079 = vand.u32 %v33, 4294901760
  %1080 = vmatmul.mubr.f32.gmra.mxu0 %v1079
  %v1081 = vpop.f32.mrf.mxu0
  %v1082 = vadd.f32 %v920, %v1081
  %v1083 = vpop.f32.mrf.mxu0
  %1084 = vmatprep.mubr.f32.mxu0 0.0
  %v1085 = vand.u32 %v36, 4294901760
  %1086 = vmatmul.mubr.f32.gmra.mxu0 %v1085
  %v1087 = vpop.f32.mrf.mxu0
  %v1088 = vadd.f32 %v926, %v1087
  %v1089 = vpop.f32.mrf.mxu0
  %1090 = vmatprep.mubr.f32.mxu0 0.0
  %v1091 = vand.u32 %v39, 4294901760
  %1092 = vmatmul.mubr.f32.gmra.mxu0 %v1091
  %v1093 = vpop.f32.mrf.mxu0
  %v1094 = vadd.f32 %v932, %v1093
  %v1095 = vpop.f32.mrf.mxu0
  %1096 = vmatprep.mubr.f32.mxu0 0.0
  %v1097 = vand.u32 %v42, 4294901760
  %1098 = vmatmul.mubr.f32.gmra.mxu0 %v1097
  %v1099 = vpop.f32.mrf.mxu0
  %v1100 = vadd.f32 %v938, %v1099
  %v1101 = vpop.f32.mrf.mxu0
  %1102 = vmatprep.mubr.f32.mxu0 0.0
  %v1103 = vand.u32 %v45, 4294901760
  %1104 = vmatmul.mubr.f32.gmra.mxu0 %v1103
  %v1105 = vpop.f32.mrf.mxu0
  %v1106 = vadd.f32 %v944, %v1105
  %v1107 = vpop.f32.mrf.mxu0
  %1108 = vmatprep.mubr.f32.mxu0 0.0
  %v1109 = vand.u32 %v48, 4294901760
  %1110 = vmatmul.mubr.f32.gmra.mxu0 %v1109
  %v1111 = vpop.f32.mrf.mxu0
  %v1112 = vadd.f32 %v950, %v1111
  %v1113 = vpop.f32.mrf.mxu0
  %1114 = vmatprep.mubr.f32.mxu0 0.0
  %v1115 = vand.u32 %v51, 4294901760
  %1116 = vmatmul.mubr.f32.gmra.mxu0 %v1115
  %v1117 = vpop.f32.mrf.mxu0
  %v1118 = vadd.f32 %v956, %v1117
  %v1119 = vpop.f32.mrf.mxu0
  %1120 = vmatprep.mubr.f32.mxu0 0.0
  %v1121 = vand.u32 %v54, 4294901760
  %1122 = vmatmul.mubr.f32.gmra.mxu0 %v1121
  %v1123 = vpop.f32.mrf.mxu0
  %v1124 = vadd.f32 %v962, %v1123
  %v1125 = vpop.f32.mrf.mxu0
  %1126 = vmatprep.mubr.f32.mxu0 0.0
  %v1127 = vand.u32 %v57, 4294901760
  %1128 = vmatmul.mubr.f32.gmra.mxu0 %v1127
  %v1129 = vpop.f32.mrf.mxu0
  %v1130 = vadd.f32 %v968, %v1129
  %v1131 = vpop.f32.mrf.mxu0
  %1132 = vmatprep.mubr.f32.mxu0 0.0
  %v1133 = vand.u32 %v60, 4294901760
  %1134 = vmatmul.mubr.f32.gmra.mxu0 %v1133
  %v1135 = vpop.f32.mrf.mxu0
  %v1136 = vadd.f32 %v974, %v1135
  %v1137 = vpop.f32.mrf.mxu0
  %1138 = vmatprep.mubr.f32.mxu0 0.0
  %v1139 = vand.u32 %v63, 4294901760
  %1140 = vmatmul.mubr.f32.gmra.mxu0 %v1139
  %v1141 = vpop.f32.mrf.mxu0
  %v1142 = vadd.f32 %v980, %v1141
  %v1143 = vpop.f32.mrf.mxu0
  %1144 = vmatprep.mubr.f32.mxu0 0.0
  %v1145 = vand.u32 %v66, 4294901760
  %1146 = vmatmul.mubr.f32.gmra.mxu0 %v1145
  %v1147 = vpop.f32.mrf.mxu0
  %v1148 = vadd.f32 %v986, %v1147
  %v1149 = vpop.f32.mrf.mxu0
  %1150 = vmatprep.mubr.f32.mxu0 0.0
  %v1151 = vand.u32 %v69, 4294901760
  %1152 = vmatmul.mubr.f32.gmra.mxu0 %v1151
  %v1153 = vpop.f32.mrf.mxu0
  %v1154 = vadd.f32 %v992, %v1153
  %v1155 = vpop.f32.mrf.mxu0
  %1156 = vmatprep.mubr.f32.mxu0 0.0
  %v1157 = vand.u32 %v72, 4294901760
  %1158 = vmatmul.mubr.f32.gmra.mxu0 %v1157
  %v1159 = vpop.f32.mrf.mxu0
  %v1160 = vadd.f32 %v998, %v1159
  %v1161 = vpop.f32.mrf.mxu0
  %1162 = vmatprep.mubr.f32.mxu0 0.0
  %v1163 = vand.u32 %v75, 4294901760
  %1164 = vmatmul.mubr.f32.gmra.mxu0 %v1163
  %v1165 = vpop.f32.mrf.mxu0
  %v1166 = vadd.f32 %v1004, %v1165
  %v1167 = vpop.f32.mrf.mxu0
  %1168 = vmatprep.mubr.f32.mxu0 0.0
  %v1169 = vand.u32 %v78, 4294901760
  %1170 = vmatmul.mubr.f32.gmra.mxu0 %v1169
  %v1171 = vpop.f32.mrf.mxu0
  %v1172 = vadd.f32 %v1010, %v1171
  %v1173 = vpop.f32.mrf.mxu0
  %1174 = vdwg.mxu0
  %v1175 = vld [vmem:[%s2] sm:$0x1]
  %v1177 = vlaneseq
  %v1178 = vshrl.u32 %v1177, 7
  %v1179 = vsub.s32 0, %v1178
  %v1180 = vrot.slane %v1175, %v1179
  %v1182 = vadd.f32 %v1082, %v1180
  %v1183 = vadd.f32 %v1088, %v1180
  %v1184 = vadd.f32 %v1094, %v1180
  %v1185 = vadd.f32 %v1100, %v1180
  %v1186 = vadd.f32 %v1106, %v1180
  %v1187 = vadd.f32 %v1112, %v1180
  %v1188 = vadd.f32 %v1118, %v1180
  %v1189 = vadd.f32 %v1124, %v1180
  %v1190 = vadd.f32 %v1130, %v1180
  %v1191 = vadd.f32 %v1136, %v1180
  %v1192 = vadd.f32 %v1142, %v1180
  %v1193 = vadd.f32 %v1148, %v1180
  %v1194 = vadd.f32 %v1154, %v1180
  %v1195 = vadd.f32 %v1160, %v1180
  %v1196 = vadd.f32 %v1166, %v1180
  %v1197 = vadd.f32 %v1172, %v1180
  %v1198 = vand.u32 2147483647, %v1182
  %vm1199 = vcmp.le.f32.partialorder %v1198, 0.7853982
  %vm1200 = vcmp.lt.s32.totalorder %v1182, 0
  %v1201 = vand.u32 %v1182, 2139095040
  %v1202 = vshrl.u32 %v1201, 23
  %v1203 = vsub.s32 %v1202, 127
  %v1204 = vand.u32 2147483647, %v1182
  %v1205 = vand.u32 %v1204, 8388607
  %v1206 = vor.u32 %v1205, 8388608
  %v1207 = vsub.s32 0, %v1206
  %v1208 = vadd.s32 %v1203, 1
  %vm1209 = vcmp.gt.s32.totalorder %v1208, 0
  %v1210 = vsel %vm1209, %v1208, 0
  %v1211 = vshrl.u32 %v1210, 5
  %v1212 = vand.u32 %v1210, 31
  %v1213 = vsub.s32 32, %v1212
  %v1214 = vshrl.u32 683565275, %v1213
  %v1215 = vshll.u32 683565275, %v1212
  %v1216 = vshrl.u32 2475754826, %v1213
  %v1217 = vor.u32 %v1215, %v1216
  %v1218 = vshll.u32 2475754826, %v1212
  %v1219 = vshrl.u32 2131351028, %v1213
  %v1220 = vor.u32 %v1218, %v1219
  %v1221 = vshll.u32 2131351028, %v1212
  %v1222 = vshrl.u32 2102212464, %v1213
  %v1223 = vor.u32 %v1221, %v1222
  %v1224 = vshll.u32 2102212464, %v1212
  %v1225 = vshrl.u32 920167782, %v1213
  %v1226 = vor.u32 %v1224, %v1225
  %v1227 = vshll.u32 920167782, %v1212
  %v1228 = vshrl.u32 1326507024, %v1213
  %v1229 = vor.u32 %v1227, %v1228
  %vm1230 = vcmp.lt.s32.totalorder %v1211, 1
  %vm1231 = vcmp.lt.s32.totalorder %v1211, 2
  %vm1232 = vcmp.lt.s32.totalorder %v1211, 3
  %vm1233 = vcmp.lt.s32.totalorder %v1211, 4
  %v1234 = vsel %vm1230, %v1214, %v1217
  %v1235 = vsel %vm1233, %v1223, 2102212464
  %v1236 = vsel %vm1232, %v1220, %v1235
  %v1237 = vsel %vm1231, %v1234, %v1236
  %v1238 = vsel %vm1230, %v1217, %v1220
  %v1239 = vsel %vm1233, %v1226, 920167782
  %v1240 = vsel %vm1232, %v1223, %v1239
  %v1241 = vsel %vm1231, %v1238, %v1240
  %v1242 = vsel %vm1230, %v1220, %v1223
  %v1243 = vsel %vm1233, %v1229, 1326507024
  %v1244 = vsel %vm1232, %v1226, %v1243
  %v1245 = vsel %vm1231, %v1242, %v1244
  %v1246 = vshll.u32 %v1206, 8
  %v1247 = vmul.u32.u64.compose %v1246, %v1245
  %v1248 = vextract.low.u32 %v1247
  %v1249 = vextract.high.u32 %v1247
  %v1250 = vmul.u32.u64.compose %v1246, %v1241
  %v1251 = vextract.low.u32 %v1250
  %v1252 = vextract.high.u32 %v1250
  %v1253 = vmul.u32 %v1246, %v1237
  %v1254 = vadd.s32 %v1249, %v1251
  %vm1255 = vc.u32 %v1249, %v1251
  %v1256 = vadd.s32 %v1252, 1
  %v1257 = vsel %vm1255, %v1256, %v1252
  %v1258 = vadd.s32 %v1253, %v1257
  %v1259 = vadd.s32 %v1258, 536870912
  %v1260 = vshrl.u32 %v1259, 30
  %v1261 = vshll.u32 %v1260, 30
  %v1262 = vsub.s32 %v1258, %v1261
  %vm1263 = vcmp.lt.s32.totalorder %v1262, 0
  %v1264 = vsub.s32 0, %v1262
  %v1265 = vsel %vm1263, %v1264, %v1262
  %v1266 = vclz %v1265
  %v1267 = vsub.s32 %v1266, 2
  %vm1268 = vcmp.gt.s32.totalorder 0, %v1267
  %v1269 = vsel %vm1268, 0, %v1267
  %v1270 = vsub.s32 32, %v1269
  %v1271 = vshll.u32 %v1262, %v1269
  %v1272 = vshrl.u32 %v1254, %v1270
  %v1273 = vor.u32 %v1271, %v1272
  %v1274 = vsub.s32 4294967266, %v1269
  %v1275 = vadd.s32 %v1274, 127
  %v1276 = vshll.u32 %v1275, 23
  %v1277 = vor.u32 4788187, %v1276
  %v1278 = vand.u32 2147483647, %v1277
  %v1280 = vcvt.s32.f32 %v1273
  %v1281 = vmul.f32 %v1280, %v1278
  %v1282 = vxor.u32 %v1281, 2147483648
  %v1283 = vsel %vm1200, %v1282, %v1281
  %v1284 = vsub.s32 4, %v1260
  %v1285 = vsel %vm1200, %v1284, %v1260
  %v1286 = vsel %vm1199, %v1182, %v1283
  %v1287 = vsel %vm1199, 0, %v1285
  %v1288 = vcosq.f32.pop %v1286
  %v1289 = vsinq.f32.pop %v1286
  %vm1290 = vweird.f32 %v1182
  %v1291 = vadd.s32 %v1287, 3
  %v1292 = vand.u32 %v1291, 3
  %vm1293 = vcmp.lt.s32.totalorder %v1292, 2
  %vm1294 = vcmp.eq.s32.totalorder %v1292, 0
  %v1295 = vxor.u32 %v1289, 2147483648
  %v1296 = vsel %vm1294, %v1288, %v1295
  %vm1297 = vcmp.eq.s32.totalorder %v1292, 2
  %v1298 = vxor.u32 %v1288, 2147483648
  %v1299 = vsel %vm1297, %v1298, %v1289
  %v1300 = vsel %vm1293, %v1296, %v1299
  %v1301 = vsel %vm1290, nan, %v1300
  %v1302 = vand.u32 2147483647, %v1183
  %vm1303 = vcmp.le.f32.partialorder %v1302, 0.7853982
  %vm1304 = vcmp.lt.s32.totalorder %v1183, 0
  %v1305 = vand.u32 %v1183, 2139095040
  %v1306 = vshrl.u32 %v1305, 23
  %v1307 = vsub.s32 %v1306, 127
  %v1308 = vand.u32 2147483647, %v1183
  %v1309 = vand.u32 %v1308, 8388607
  %v1310 = vor.u32 %v1309, 8388608
  %v1311 = vsub.s32 0, %v1310
  %v1312 = vadd.s32 %v1307, 1
  %vm1313 = vcmp.gt.s32.totalorder %v1312, 0
  %v1314 = vsel %vm1313, %v1312, 0
  %v1315 = vshrl.u32 %v1314, 5
  %v1316 = vand.u32 %v1314, 31
  %v1317 = vsub.s32 32, %v1316
  %v1318 = vshrl.u32 683565275, %v1317
  %v1319 = vshll.u32 683565275, %v1316
  %v1320 = vshrl.u32 2475754826, %v1317
  %v1321 = vor.u32 %v1319, %v1320
  %v1322 = vshll.u32 2475754826, %v1316
  %v1323 = vshrl.u32 2131351028, %v1317
  %v1324 = vor.u32 %v1322, %v1323
  %v1325 = vshll.u32 2131351028, %v1316
  %v1326 = vshrl.u32 2102212464, %v1317
  %v1327 = vor.u32 %v1325, %v1326
  %v1328 = vshll.u32 2102212464, %v1316
  %v1329 = vshrl.u32 920167782, %v1317
  %v1330 = vor.u32 %v1328, %v1329
  %v1331 = vshll.u32 920167782, %v1316
  %v1332 = vshrl.u32 1326507024, %v1317
  %v1333 = vor.u32 %v1331, %v1332
  %vm1334 = vcmp.lt.s32.totalorder %v1315, 1
  %vm1335 = vcmp.lt.s32.totalorder %v1315, 2
  %vm1336 = vcmp.lt.s32.totalorder %v1315, 3
  %vm1337 = vcmp.lt.s32.totalorder %v1315, 4
  %v1338 = vsel %vm1334, %v1318, %v1321
  %v1339 = vsel %vm1337, %v1327, 2102212464
  %v1340 = vsel %vm1336, %v1324, %v1339
  %v1341 = vsel %vm1335, %v1338, %v1340
  %v1342 = vsel %vm1334, %v1321, %v1324
  %v1343 = vsel %vm1337, %v1330, 920167782
  %v1344 = vsel %vm1336, %v1327, %v1343
  %v1345 = vsel %vm1335, %v1342, %v1344
  %v1346 = vsel %vm1334, %v1324, %v1327
  %v1347 = vsel %vm1337, %v1333, 1326507024
  %v1348 = vsel %vm1336, %v1330, %v1347
  %v1349 = vsel %vm1335, %v1346, %v1348
  %v1350 = vshll.u32 %v1310, 8
  %v1351 = vmul.u32.u64.compose %v1350, %v1349
  %v1352 = vextract.low.u32 %v1351
  %v1353 = vextract.high.u32 %v1351
  %v1354 = vmul.u32.u64.compose %v1350, %v1345
  %v1355 = vextract.low.u32 %v1354
  %v1356 = vextract.high.u32 %v1354
  %v1357 = vmul.u32 %v1350, %v1341
  %v1358 = vadd.s32 %v1353, %v1355
  %vm1359 = vc.u32 %v1353, %v1355
  %v1360 = vadd.s32 %v1356, 1
  %v1361 = vsel %vm1359, %v1360, %v1356
  %v1362 = vadd.s32 %v1357, %v1361
  %v1363 = vadd.s32 %v1362, 536870912
  %v1364 = vshrl.u32 %v1363, 30
  %v1365 = vshll.u32 %v1364, 30
  %v1366 = vsub.s32 %v1362, %v1365
  %vm1367 = vcmp.lt.s32.totalorder %v1366, 0
  %v1368 = vsub.s32 0, %v1366
  %v1369 = vsel %vm1367, %v1368, %v1366
  %v1370 = vclz %v1369
  %v1371 = vsub.s32 %v1370, 2
  %vm1372 = vcmp.gt.s32.totalorder 0, %v1371
  %v1373 = vsel %vm1372, 0, %v1371
  %v1374 = vsub.s32 32, %v1373
  %v1375 = vshll.u32 %v1366, %v1373
  %v1376 = vshrl.u32 %v1358, %v1374
  %v1377 = vor.u32 %v1375, %v1376
  %v1378 = vsub.s32 4294967266, %v1373
  %v1379 = vadd.s32 %v1378, 127
  %v1380 = vshll.u32 %v1379, 23
  %v1381 = vor.u32 4788187, %v1380
  %v1382 = vand.u32 2147483647, %v1381
  %v1384 = vcvt.s32.f32 %v1377
  %v1385 = vmul.f32 %v1384, %v1382
  %v1386 = vxor.u32 %v1385, 2147483648
  %v1387 = vsel %vm1304, %v1386, %v1385
  %v1388 = vsub.s32 4, %v1364
  %v1389 = vsel %vm1304, %v1388, %v1364
  %v1390 = vsel %vm1303, %v1183, %v1387
  %v1391 = vsel %vm1303, 0, %v1389
  %v1392 = vcosq.f32.pop %v1390
  %v1393 = vsinq.f32.pop %v1390
  %vm1394 = vweird.f32 %v1183
  %v1395 = vadd.s32 %v1391, 3
  %v1396 = vand.u32 %v1395, 3
  %vm1397 = vcmp.lt.s32.totalorder %v1396, 2
  %vm1398 = vcmp.eq.s32.totalorder %v1396, 0
  %v1399 = vxor.u32 %v1393, 2147483648
  %v1400 = vsel %vm1398, %v1392, %v1399
  %vm1401 = vcmp.eq.s32.totalorder %v1396, 2
  %v1402 = vxor.u32 %v1392, 2147483648
  %v1403 = vsel %vm1401, %v1402, %v1393
  %v1404 = vsel %vm1397, %v1400, %v1403
  %v1405 = vsel %vm1394, nan, %v1404
  %v1406 = vand.u32 2147483647, %v1184
  %vm1407 = vcmp.le.f32.partialorder %v1406, 0.7853982
  %vm1408 = vcmp.lt.s32.totalorder %v1184, 0
  %v1409 = vand.u32 %v1184, 2139095040
  %v1410 = vshrl.u32 %v1409, 23
  %v1411 = vsub.s32 %v1410, 127
  %v1412 = vand.u32 2147483647, %v1184
  %v1413 = vand.u32 %v1412, 8388607
  %v1414 = vor.u32 %v1413, 8388608
  %v1415 = vsub.s32 0, %v1414
  %v1416 = vadd.s32 %v1411, 1
  %vm1417 = vcmp.gt.s32.totalorder %v1416, 0
  %v1418 = vsel %vm1417, %v1416, 0
  %v1419 = vshrl.u32 %v1418, 5
  %v1420 = vand.u32 %v1418, 31
  %v1421 = vsub.s32 32, %v1420
  %v1422 = vshrl.u32 683565275, %v1421
  %v1423 = vshll.u32 683565275, %v1420
  %v1424 = vshrl.u32 2475754826, %v1421
  %v1425 = vor.u32 %v1423, %v1424
  %v1426 = vshll.u32 2475754826, %v1420
  %v1427 = vshrl.u32 2131351028, %v1421
  %v1428 = vor.u32 %v1426, %v1427
  %v1429 = vshll.u32 2131351028, %v1420
  %v1430 = vshrl.u32 2102212464, %v1421
  %v1431 = vor.u32 %v1429, %v1430
  %v1432 = vshll.u32 2102212464, %v1420
  %v1433 = vshrl.u32 920167782, %v1421
  %v1434 = vor.u32 %v1432, %v1433
  %v1435 = vshll.u32 920167782, %v1420
  %v1436 = vshrl.u32 1326507024, %v1421
  %v1437 = vor.u32 %v1435, %v1436
  %vm1438 = vcmp.lt.s32.totalorder %v1419, 1
  %vm1439 = vcmp.lt.s32.totalorder %v1419, 2
  %vm1440 = vcmp.lt.s32.totalorder %v1419, 3
  %vm1441 = vcmp.lt.s32.totalorder %v1419, 4
  %v1442 = vsel %vm1438, %v1422, %v1425
  %v1443 = vsel %vm1441, %v1431, 2102212464
  %v1444 = vsel %vm1440, %v1428, %v1443
  %v1445 = vsel %vm1439, %v1442, %v1444
  %v1446 = vsel %vm1438, %v1425, %v1428
  %v1447 = vsel %vm1441, %v1434, 920167782
  %v1448 = vsel %vm1440, %v1431, %v1447
  %v1449 = vsel %vm1439, %v1446, %v1448
  %v1450 = vsel %vm1438, %v1428, %v1431
  %v1451 = vsel %vm1441, %v1437, 1326507024
  %v1452 = vsel %vm1440, %v1434, %v1451
  %v1453 = vsel %vm1439, %v1450, %v1452
  %v1454 = vshll.u32 %v1414, 8
  %v1455 = vmul.u32.u64.compose %v1454, %v1453
  %v1456 = vextract.low.u32 %v1455
  %v1457 = vextract.high.u32 %v1455
  %v1458 = vmul.u32.u64.compose %v1454, %v1449
  %v1459 = vextract.low.u32 %v1458
  %v1460 = vextract.high.u32 %v1458
  %v1461 = vmul.u32 %v1454, %v1445
  %v1462 = vadd.s32 %v1457, %v1459
  %vm1463 = vc.u32 %v1457, %v1459
  %v1464 = vadd.s32 %v1460, 1
  %v1465 = vsel %vm1463, %v1464, %v1460
  %v1466 = vadd.s32 %v1461, %v1465
  %v1467 = vadd.s32 %v1466, 536870912
  %v1468 = vshrl.u32 %v1467, 30
  %v1469 = vshll.u32 %v1468, 30
  %v1470 = vsub.s32 %v1466, %v1469
  %vm1471 = vcmp.lt.s32.totalorder %v1470, 0
  %v1472 = vsub.s32 0, %v1470
  %v1473 = vsel %vm1471, %v1472, %v1470
  %v1474 = vclz %v1473
  %v1475 = vsub.s32 %v1474, 2
  %vm1476 = vcmp.gt.s32.totalorder 0, %v1475
  %v1477 = vsel %vm1476, 0, %v1475
  %v1478 = vsub.s32 32, %v1477
  %v1479 = vshll.u32 %v1470, %v1477
  %v1480 = vshrl.u32 %v1462, %v1478
  %v1481 = vor.u32 %v1479, %v1480
  %v1482 = vsub.s32 4294967266, %v1477
  %v1483 = vadd.s32 %v1482, 127
  %v1484 = vshll.u32 %v1483, 23
  %v1485 = vor.u32 4788187, %v1484
  %v1486 = vand.u32 2147483647, %v1485
  %v1488 = vcvt.s32.f32 %v1481
  %v1489 = vmul.f32 %v1488, %v1486
  %v1490 = vxor.u32 %v1489, 2147483648
  %v1491 = vsel %vm1408, %v1490, %v1489
  %v1492 = vsub.s32 4, %v1468
  %v1493 = vsel %vm1408, %v1492, %v1468
  %v1494 = vsel %vm1407, %v1184, %v1491
  %v1495 = vsel %vm1407, 0, %v1493
  %v1496 = vcosq.f32.pop %v1494
  %v1497 = vsinq.f32.pop %v1494
  %vm1498 = vweird.f32 %v1184
  %v1499 = vadd.s32 %v1495, 3
  %v1500 = vand.u32 %v1499, 3
  %vm1501 = vcmp.lt.s32.totalorder %v1500, 2
  %vm1502 = vcmp.eq.s32.totalorder %v1500, 0
  %v1503 = vxor.u32 %v1497, 2147483648
  %v1504 = vsel %vm1502, %v1496, %v1503
  %vm1505 = vcmp.eq.s32.totalorder %v1500, 2
  %v1506 = vxor.u32 %v1496, 2147483648
  %v1507 = vsel %vm1505, %v1506, %v1497
  %v1508 = vsel %vm1501, %v1504, %v1507
  %v1509 = vsel %vm1498, nan, %v1508
  %v1510 = vand.u32 2147483647, %v1185
  %vm1511 = vcmp.le.f32.partialorder %v1510, 0.7853982
  %vm1512 = vcmp.lt.s32.totalorder %v1185, 0
  %v1513 = vand.u32 %v1185, 2139095040
  %v1514 = vshrl.u32 %v1513, 23
  %v1515 = vsub.s32 %v1514, 127
  %v1516 = vand.u32 2147483647, %v1185
  %v1517 = vand.u32 %v1516, 8388607
  %v1518 = vor.u32 %v1517, 8388608
  %v1519 = vsub.s32 0, %v1518
  %v1520 = vadd.s32 %v1515, 1
  %vm1521 = vcmp.gt.s32.totalorder %v1520, 0
  %v1522 = vsel %vm1521, %v1520, 0
  %v1523 = vshrl.u32 %v1522, 5
  %v1524 = vand.u32 %v1522, 31
  %v1525 = vsub.s32 32, %v1524
  %v1526 = vshrl.u32 683565275, %v1525
  %v1527 = vshll.u32 683565275, %v1524
  %v1528 = vshrl.u32 2475754826, %v1525
  %v1529 = vor.u32 %v1527, %v1528
  %v1530 = vshll.u32 2475754826, %v1524
  %v1531 = vshrl.u32 2131351028, %v1525
  %v1532 = vor.u32 %v1530, %v1531
  %v1533 = vshll.u32 2131351028, %v1524
  %v1534 = vshrl.u32 2102212464, %v1525
  %v1535 = vor.u32 %v1533, %v1534
  %v1536 = vshll.u32 2102212464, %v1524
  %v1537 = vshrl.u32 920167782, %v1525
  %v1538 = vor.u32 %v1536, %v1537
  %v1539 = vshll.u32 920167782, %v1524
  %v1540 = vshrl.u32 1326507024, %v1525
  %v1541 = vor.u32 %v1539, %v1540
  %vm1542 = vcmp.lt.s32.totalorder %v1523, 1
  %vm1543 = vcmp.lt.s32.totalorder %v1523, 2
  %vm1544 = vcmp.lt.s32.totalorder %v1523, 3
  %vm1545 = vcmp.lt.s32.totalorder %v1523, 4
  %v1546 = vsel %vm1542, %v1526, %v1529
  %v1547 = vsel %vm1545, %v1535, 2102212464
  %v1548 = vsel %vm1544, %v1532, %v1547
  %v1549 = vsel %vm1543, %v1546, %v1548
  %v1550 = vsel %vm1542, %v1529, %v1532
  %v1551 = vsel %vm1545, %v1538, 920167782
  %v1552 = vsel %vm1544, %v1535, %v1551
  %v1553 = vsel %vm1543, %v1550, %v1552
  %v1554 = vsel %vm1542, %v1532, %v1535
  %v1555 = vsel %vm1545, %v1541, 1326507024
  %v1556 = vsel %vm1544, %v1538, %v1555
  %v1557 = vsel %vm1543, %v1554, %v1556
  %v1558 = vshll.u32 %v1518, 8
  %v1559 = vmul.u32.u64.compose %v1558, %v1557
  %v1560 = vextract.low.u32 %v1559
  %v1561 = vextract.high.u32 %v1559
  %v1562 = vmul.u32.u64.compose %v1558, %v1553
  %v1563 = vextract.low.u32 %v1562
  %v1564 = vextract.high.u32 %v1562
  %v1565 = vmul.u32 %v1558, %v1549
  %v1566 = vadd.s32 %v1561, %v1563
  %vm1567 = vc.u32 %v1561, %v1563
  %v1568 = vadd.s32 %v1564, 1
  %v1569 = vsel %vm1567, %v1568, %v1564
  %v1570 = vadd.s32 %v1565, %v1569
  %v1571 = vadd.s32 %v1570, 536870912
  %v1572 = vshrl.u32 %v1571, 30
  %v1573 = vshll.u32 %v1572, 30
  %v1574 = vsub.s32 %v1570, %v1573
  %vm1575 = vcmp.lt.s32.totalorder %v1574, 0
  %v1576 = vsub.s32 0, %v1574
  %v1577 = vsel %vm1575, %v1576, %v1574
  %v1578 = vclz %v1577
  %v1579 = vsub.s32 %v1578, 2
  %vm1580 = vcmp.gt.s32.totalorder 0, %v1579
  %v1581 = vsel %vm1580, 0, %v1579
  %v1582 = vsub.s32 32, %v1581
  %v1583 = vshll.u32 %v1574, %v1581
  %v1584 = vshrl.u32 %v1566, %v1582
  %v1585 = vor.u32 %v1583, %v1584
  %v1586 = vsub.s32 4294967266, %v1581
  %v1587 = vadd.s32 %v1586, 127
  %v1588 = vshll.u32 %v1587, 23
  %v1589 = vor.u32 4788187, %v1588
  %v1590 = vand.u32 2147483647, %v1589
  %v1592 = vcvt.s32.f32 %v1585
  %v1593 = vmul.f32 %v1592, %v1590
  %v1594 = vxor.u32 %v1593, 2147483648
  %v1595 = vsel %vm1512, %v1594, %v1593
  %v1596 = vsub.s32 4, %v1572
  %v1597 = vsel %vm1512, %v1596, %v1572
  %v1598 = vsel %vm1511, %v1185, %v1595
  %v1599 = vsel %vm1511, 0, %v1597
  %v1600 = vcosq.f32.pop %v1598
  %v1601 = vsinq.f32.pop %v1598
  %vm1602 = vweird.f32 %v1185
  %v1603 = vadd.s32 %v1599, 3
  %v1604 = vand.u32 %v1603, 3
  %vm1605 = vcmp.lt.s32.totalorder %v1604, 2
  %vm1606 = vcmp.eq.s32.totalorder %v1604, 0
  %v1607 = vxor.u32 %v1601, 2147483648
  %v1608 = vsel %vm1606, %v1600, %v1607
  %vm1609 = vcmp.eq.s32.totalorder %v1604, 2
  %v1610 = vxor.u32 %v1600, 2147483648
  %v1611 = vsel %vm1609, %v1610, %v1601
  %v1612 = vsel %vm1605, %v1608, %v1611
  %v1613 = vsel %vm1602, nan, %v1612
  %v1614 = vand.u32 2147483647, %v1186
  %vm1615 = vcmp.le.f32.partialorder %v1614, 0.7853982
  %vm1616 = vcmp.lt.s32.totalorder %v1186, 0
  %v1617 = vand.u32 %v1186, 2139095040
  %v1618 = vshrl.u32 %v1617, 23
  %v1619 = vsub.s32 %v1618, 127
  %v1620 = vand.u32 2147483647, %v1186
  %v1621 = vand.u32 %v1620, 8388607
  %v1622 = vor.u32 %v1621, 8388608
  %v1623 = vsub.s32 0, %v1622
  %v1624 = vadd.s32 %v1619, 1
  %vm1625 = vcmp.gt.s32.totalorder %v1624, 0
  %v1626 = vsel %vm1625, %v1624, 0
  %v1627 = vshrl.u32 %v1626, 5
  %v1628 = vand.u32 %v1626, 31
  %v1629 = vsub.s32 32, %v1628
  %v1630 = vshrl.u32 683565275, %v1629
  %v1631 = vshll.u32 683565275, %v1628
  %v1632 = vshrl.u32 2475754826, %v1629
  %v1633 = vor.u32 %v1631, %v1632
  %v1634 = vshll.u32 2475754826, %v1628
  %v1635 = vshrl.u32 2131351028, %v1629
  %v1636 = vor.u32 %v1634, %v1635
  %v1637 = vshll.u32 2131351028, %v1628
  %v1638 = vshrl.u32 2102212464, %v1629
  %v1639 = vor.u32 %v1637, %v1638
  %v1640 = vshll.u32 2102212464, %v1628
  %v1641 = vshrl.u32 920167782, %v1629
  %v1642 = vor.u32 %v1640, %v1641
  %v1643 = vshll.u32 920167782, %v1628
  %v1644 = vshrl.u32 1326507024, %v1629
  %v1645 = vor.u32 %v1643, %v1644
  %vm1646 = vcmp.lt.s32.totalorder %v1627, 1
  %vm1647 = vcmp.lt.s32.totalorder %v1627, 2
  %vm1648 = vcmp.lt.s32.totalorder %v1627, 3
  %vm1649 = vcmp.lt.s32.totalorder %v1627, 4
  %v1650 = vsel %vm1646, %v1630, %v1633
  %v1651 = vsel %vm1649, %v1639, 2102212464
  %v1652 = vsel %vm1648, %v1636, %v1651
  %v1653 = vsel %vm1647, %v1650, %v1652
  %v1654 = vsel %vm1646, %v1633, %v1636
  %v1655 = vsel %vm1649, %v1642, 920167782
  %v1656 = vsel %vm1648, %v1639, %v1655
  %v1657 = vsel %vm1647, %v1654, %v1656
  %v1658 = vsel %vm1646, %v1636, %v1639
  %v1659 = vsel %vm1649, %v1645, 1326507024
  %v1660 = vsel %vm1648, %v1642, %v1659
  %v1661 = vsel %vm1647, %v1658, %v1660
  %v1662 = vshll.u32 %v1622, 8
  %v1663 = vmul.u32.u64.compose %v1662, %v1661
  %v1664 = vextract.low.u32 %v1663
  %v1665 = vextract.high.u32 %v1663
  %v1666 = vmul.u32.u64.compose %v1662, %v1657
  %v1667 = vextract.low.u32 %v1666
  %v1668 = vextract.high.u32 %v1666
  %v1669 = vmul.u32 %v1662, %v1653
  %v1670 = vadd.s32 %v1665, %v1667
  %vm1671 = vc.u32 %v1665, %v1667
  %v1672 = vadd.s32 %v1668, 1
  %v1673 = vsel %vm1671, %v1672, %v1668
  %v1674 = vadd.s32 %v1669, %v1673
  %v1675 = vadd.s32 %v1674, 536870912
  %v1676 = vshrl.u32 %v1675, 30
  %v1677 = vshll.u32 %v1676, 30
  %v1678 = vsub.s32 %v1674, %v1677
  %vm1679 = vcmp.lt.s32.totalorder %v1678, 0
  %v1680 = vsub.s32 0, %v1678
  %v1681 = vsel %vm1679, %v1680, %v1678
  %v1682 = vclz %v1681
  %v1683 = vsub.s32 %v1682, 2
  %vm1684 = vcmp.gt.s32.totalorder 0, %v1683
  %v1685 = vsel %vm1684, 0, %v1683
  %v1686 = vsub.s32 32, %v1685
  %v1687 = vshll.u32 %v1678, %v1685
  %v1688 = vshrl.u32 %v1670, %v1686
  %v1689 = vor.u32 %v1687, %v1688
  %v1690 = vsub.s32 4294967266, %v1685
  %v1691 = vadd.s32 %v1690, 127
  %v1692 = vshll.u32 %v1691, 23
  %v1693 = vor.u32 4788187, %v1692
  %v1694 = vand.u32 2147483647, %v1693
  %v1696 = vcvt.s32.f32 %v1689
  %v1697 = vmul.f32 %v1696, %v1694
  %v1698 = vxor.u32 %v1697, 2147483648
  %v1699 = vsel %vm1616, %v1698, %v1697
  %v1700 = vsub.s32 4, %v1676
  %v1701 = vsel %vm1616, %v1700, %v1676
  %v1702 = vsel %vm1615, %v1186, %v1699
  %v1703 = vsel %vm1615, 0, %v1701
  %v1704 = vcosq.f32.pop %v1702
  %v1705 = vsinq.f32.pop %v1702
  %vm1706 = vweird.f32 %v1186
  %v1707 = vadd.s32 %v1703, 3
  %v1708 = vand.u32 %v1707, 3
  %vm1709 = vcmp.lt.s32.totalorder %v1708, 2
  %vm1710 = vcmp.eq.s32.totalorder %v1708, 0
  %v1711 = vxor.u32 %v1705, 2147483648
  %v1712 = vsel %vm1710, %v1704, %v1711
  %vm1713 = vcmp.eq.s32.totalorder %v1708, 2
  %v1714 = vxor.u32 %v1704, 2147483648
  %v1715 = vsel %vm1713, %v1714, %v1705
  %v1716 = vsel %vm1709, %v1712, %v1715
  %v1717 = vsel %vm1706, nan, %v1716
  %v1718 = vand.u32 2147483647, %v1187
  %vm1719 = vcmp.le.f32.partialorder %v1718, 0.7853982
  %vm1720 = vcmp.lt.s32.totalorder %v1187, 0
  %v1721 = vand.u32 %v1187, 2139095040
  %v1722 = vshrl.u32 %v1721, 23
  %v1723 = vsub.s32 %v1722, 127
  %v1724 = vand.u32 2147483647, %v1187
  %v1725 = vand.u32 %v1724, 8388607
  %v1726 = vor.u32 %v1725, 8388608
  %v1727 = vsub.s32 0, %v1726
  %v1728 = vadd.s32 %v1723, 1
  %vm1729 = vcmp.gt.s32.totalorder %v1728, 0
  %v1730 = vsel %vm1729, %v1728, 0
  %v1731 = vshrl.u32 %v1730, 5
  %v1732 = vand.u32 %v1730, 31
  %v1733 = vsub.s32 32, %v1732
  %v1734 = vshrl.u32 683565275, %v1733
  %v1735 = vshll.u32 683565275, %v1732
  %v1736 = vshrl.u32 2475754826, %v1733
  %v1737 = vor.u32 %v1735, %v1736
  %v1738 = vshll.u32 2475754826, %v1732
  %v1739 = vshrl.u32 2131351028, %v1733
  %v1740 = vor.u32 %v1738, %v1739
  %v1741 = vshll.u32 2131351028, %v1732
  %v1742 = vshrl.u32 2102212464, %v1733
  %v1743 = vor.u32 %v1741, %v1742
  %v1744 = vshll.u32 2102212464, %v1732
  %v1745 = vshrl.u32 920167782, %v1733
  %v1746 = vor.u32 %v1744, %v1745
  %v1747 = vshll.u32 920167782, %v1732
  %v1748 = vshrl.u32 1326507024, %v1733
  %v1749 = vor.u32 %v1747, %v1748
  %vm1750 = vcmp.lt.s32.totalorder %v1731, 1
  %vm1751 = vcmp.lt.s32.totalorder %v1731, 2
  %vm1752 = vcmp.lt.s32.totalorder %v1731, 3
  %vm1753 = vcmp.lt.s32.totalorder %v1731, 4
  %v1754 = vsel %vm1750, %v1734, %v1737
  %v1755 = vsel %vm1753, %v1743, 2102212464
  %v1756 = vsel %vm1752, %v1740, %v1755
  %v1757 = vsel %vm1751, %v1754, %v1756
  %v1758 = vsel %vm1750, %v1737, %v1740
  %v1759 = vsel %vm1753, %v1746, 920167782
  %v1760 = vsel %vm1752, %v1743, %v1759
  %v1761 = vsel %vm1751, %v1758, %v1760
  %v1762 = vsel %vm1750, %v1740, %v1743
  %v1763 = vsel %vm1753, %v1749, 1326507024
  %v1764 = vsel %vm1752, %v1746, %v1763
  %v1765 = vsel %vm1751, %v1762, %v1764
  %v1766 = vshll.u32 %v1726, 8
  %v1767 = vmul.u32.u64.compose %v1766, %v1765
  %v1768 = vextract.low.u32 %v1767
  %v1769 = vextract.high.u32 %v1767
  %v1770 = vmul.u32.u64.compose %v1766, %v1761
  %v1771 = vextract.low.u32 %v1770
  %v1772 = vextract.high.u32 %v1770
  %v1773 = vmul.u32 %v1766, %v1757
  %v1774 = vadd.s32 %v1769, %v1771
  %vm1775 = vc.u32 %v1769, %v1771
  %v1776 = vadd.s32 %v1772, 1
  %v1777 = vsel %vm1775, %v1776, %v1772
  %v1778 = vadd.s32 %v1773, %v1777
  %v1779 = vadd.s32 %v1778, 536870912
  %v1780 = vshrl.u32 %v1779, 30
  %v1781 = vshll.u32 %v1780, 30
  %v1782 = vsub.s32 %v1778, %v1781
  %vm1783 = vcmp.lt.s32.totalorder %v1782, 0
  %v1784 = vsub.s32 0, %v1782
  %v1785 = vsel %vm1783, %v1784, %v1782
  %v1786 = vclz %v1785
  %v1787 = vsub.s32 %v1786, 2
  %vm1788 = vcmp.gt.s32.totalorder 0, %v1787
  %v1789 = vsel %vm1788, 0, %v1787
  %v1790 = vsub.s32 32, %v1789
  %v1791 = vshll.u32 %v1782, %v1789
  %v1792 = vshrl.u32 %v1774, %v1790
  %v1793 = vor.u32 %v1791, %v1792
  %v1794 = vsub.s32 4294967266, %v1789
  %v1795 = vadd.s32 %v1794, 127
  %v1796 = vshll.u32 %v1795, 23
  %v1797 = vor.u32 4788187, %v1796
  %v1798 = vand.u32 2147483647, %v1797
  %v1800 = vcvt.s32.f32 %v1793
  %v1801 = vmul.f32 %v1800, %v1798
  %v1802 = vxor.u32 %v1801, 2147483648
  %v1803 = vsel %vm1720, %v1802, %v1801
  %v1804 = vsub.s32 4, %v1780
  %v1805 = vsel %vm1720, %v1804, %v1780
  %v1806 = vsel %vm1719, %v1187, %v1803
  %v1807 = vsel %vm1719, 0, %v1805
  %v1808 = vcosq.f32.pop %v1806
  %v1809 = vsinq.f32.pop %v1806
  %vm1810 = vweird.f32 %v1187
  %v1811 = vadd.s32 %v1807, 3
  %v1812 = vand.u32 %v1811, 3
  %vm1813 = vcmp.lt.s32.totalorder %v1812, 2
  %vm1814 = vcmp.eq.s32.totalorder %v1812, 0
  %v1815 = vxor.u32 %v1809, 2147483648
  %v1816 = vsel %vm1814, %v1808, %v1815
  %vm1817 = vcmp.eq.s32.totalorder %v1812, 2
  %v1818 = vxor.u32 %v1808, 2147483648
  %v1819 = vsel %vm1817, %v1818, %v1809
  %v1820 = vsel %vm1813, %v1816, %v1819
  %v1821 = vsel %vm1810, nan, %v1820
  %v1822 = vand.u32 2147483647, %v1188
  %vm1823 = vcmp.le.f32.partialorder %v1822, 0.7853982
  %vm1824 = vcmp.lt.s32.totalorder %v1188, 0
  %v1825 = vand.u32 %v1188, 2139095040
  %v1826 = vshrl.u32 %v1825, 23
  %v1827 = vsub.s32 %v1826, 127
  %v1828 = vand.u32 2147483647, %v1188
  %v1829 = vand.u32 %v1828, 8388607
  %v1830 = vor.u32 %v1829, 8388608
  %v1831 = vsub.s32 0, %v1830
  %v1832 = vadd.s32 %v1827, 1
  %vm1833 = vcmp.gt.s32.totalorder %v1832, 0
  %v1834 = vsel %vm1833, %v1832, 0
  %v1835 = vshrl.u32 %v1834, 5
  %v1836 = vand.u32 %v1834, 31
  %v1837 = vsub.s32 32, %v1836
  %v1838 = vshrl.u32 683565275, %v1837
  %v1839 = vshll.u32 683565275, %v1836
  %v1840 = vshrl.u32 2475754826, %v1837
  %v1841 = vor.u32 %v1839, %v1840
  %v1842 = vshll.u32 2475754826, %v1836
  %v1843 = vshrl.u32 2131351028, %v1837
  %v1844 = vor.u32 %v1842, %v1843
  %v1845 = vshll.u32 2131351028, %v1836
  %v1846 = vshrl.u32 2102212464, %v1837
  %v1847 = vor.u32 %v1845, %v1846
  %v1848 = vshll.u32 2102212464, %v1836
  %v1849 = vshrl.u32 920167782, %v1837
  %v1850 = vor.u32 %v1848, %v1849
  %v1851 = vshll.u32 920167782, %v1836
  %v1852 = vshrl.u32 1326507024, %v1837
  %v1853 = vor.u32 %v1851, %v1852
  %vm1854 = vcmp.lt.s32.totalorder %v1835, 1
  %vm1855 = vcmp.lt.s32.totalorder %v1835, 2
  %vm1856 = vcmp.lt.s32.totalorder %v1835, 3
  %vm1857 = vcmp.lt.s32.totalorder %v1835, 4
  %v1858 = vsel %vm1854, %v1838, %v1841
  %v1859 = vsel %vm1857, %v1847, 2102212464
  %v1860 = vsel %vm1856, %v1844, %v1859
  %v1861 = vsel %vm1855, %v1858, %v1860
  %v1862 = vsel %vm1854, %v1841, %v1844
  %v1863 = vsel %vm1857, %v1850, 920167782
  %v1864 = vsel %vm1856, %v1847, %v1863
  %v1865 = vsel %vm1855, %v1862, %v1864
  %v1866 = vsel %vm1854, %v1844, %v1847
  %v1867 = vsel %vm1857, %v1853, 1326507024
  %v1868 = vsel %vm1856, %v1850, %v1867
  %v1869 = vsel %vm1855, %v1866, %v1868
  %v1870 = vshll.u32 %v1830, 8
  %v1871 = vmul.u32.u64.compose %v1870, %v1869
  %v1872 = vextract.low.u32 %v1871
  %v1873 = vextract.high.u32 %v1871
  %v1874 = vmul.u32.u64.compose %v1870, %v1865
  %v1875 = vextract.low.u32 %v1874
  %v1876 = vextract.high.u32 %v1874
  %v1877 = vmul.u32 %v1870, %v1861
  %v1878 = vadd.s32 %v1873, %v1875
  %vm1879 = vc.u32 %v1873, %v1875
  %v1880 = vadd.s32 %v1876, 1
  %v1881 = vsel %vm1879, %v1880, %v1876
  %v1882 = vadd.s32 %v1877, %v1881
  %v1883 = vadd.s32 %v1882, 536870912
  %v1884 = vshrl.u32 %v1883, 30
  %v1885 = vshll.u32 %v1884, 30
  %v1886 = vsub.s32 %v1882, %v1885
  %vm1887 = vcmp.lt.s32.totalorder %v1886, 0
  %v1888 = vsub.s32 0, %v1886
  %v1889 = vsel %vm1887, %v1888, %v1886
  %v1890 = vclz %v1889
  %v1891 = vsub.s32 %v1890, 2
  %vm1892 = vcmp.gt.s32.totalorder 0, %v1891
  %v1893 = vsel %vm1892, 0, %v1891
  %v1894 = vsub.s32 32, %v1893
  %v1895 = vshll.u32 %v1886, %v1893
  %v1896 = vshrl.u32 %v1878, %v1894
  %v1897 = vor.u32 %v1895, %v1896
  %v1898 = vsub.s32 4294967266, %v1893
  %v1899 = vadd.s32 %v1898, 127
  %v1900 = vshll.u32 %v1899, 23
  %v1901 = vor.u32 4788187, %v1900
  %v1902 = vand.u32 2147483647, %v1901
  %v1904 = vcvt.s32.f32 %v1897
  %v1905 = vmul.f32 %v1904, %v1902
  %v1906 = vxor.u32 %v1905, 2147483648
  %v1907 = vsel %vm1824, %v1906, %v1905
  %v1908 = vsub.s32 4, %v1884
  %v1909 = vsel %vm1824, %v1908, %v1884
  %v1910 = vsel %vm1823, %v1188, %v1907
  %v1911 = vsel %vm1823, 0, %v1909
  %v1912 = vcosq.f32.pop %v1910
  %v1913 = vsinq.f32.pop %v1910
  %vm1914 = vweird.f32 %v1188
  %v1915 = vadd.s32 %v1911, 3
  %v1916 = vand.u32 %v1915, 3
  %vm1917 = vcmp.lt.s32.totalorder %v1916, 2
  %vm1918 = vcmp.eq.s32.totalorder %v1916, 0
  %v1919 = vxor.u32 %v1913, 2147483648
  %v1920 = vsel %vm1918, %v1912, %v1919
  %vm1921 = vcmp.eq.s32.totalorder %v1916, 2
  %v1922 = vxor.u32 %v1912, 2147483648
  %v1923 = vsel %vm1921, %v1922, %v1913
  %v1924 = vsel %vm1917, %v1920, %v1923
  %v1925 = vsel %vm1914, nan, %v1924
  %v1926 = vand.u32 2147483647, %v1189
  %vm1927 = vcmp.le.f32.partialorder %v1926, 0.7853982
  %vm1928 = vcmp.lt.s32.totalorder %v1189, 0
  %v1929 = vand.u32 %v1189, 2139095040
  %v1930 = vshrl.u32 %v1929, 23
  %v1931 = vsub.s32 %v1930, 127
  %v1932 = vand.u32 2147483647, %v1189
  %v1933 = vand.u32 %v1932, 8388607
  %v1934 = vor.u32 %v1933, 8388608
  %v1935 = vsub.s32 0, %v1934
  %v1936 = vadd.s32 %v1931, 1
  %vm1937 = vcmp.gt.s32.totalorder %v1936, 0
  %v1938 = vsel %vm1937, %v1936, 0
  %v1939 = vshrl.u32 %v1938, 5
  %v1940 = vand.u32 %v1938, 31
  %v1941 = vsub.s32 32, %v1940
  %v1942 = vshrl.u32 683565275, %v1941
  %v1943 = vshll.u32 683565275, %v1940
  %v1944 = vshrl.u32 2475754826, %v1941
  %v1945 = vor.u32 %v1943, %v1944
  %v1946 = vshll.u32 2475754826, %v1940
  %v1947 = vshrl.u32 2131351028, %v1941
  %v1948 = vor.u32 %v1946, %v1947
  %v1949 = vshll.u32 2131351028, %v1940
  %v1950 = vshrl.u32 2102212464, %v1941
  %v1951 = vor.u32 %v1949, %v1950
  %v1952 = vshll.u32 2102212464, %v1940
  %v1953 = vshrl.u32 920167782, %v1941
  %v1954 = vor.u32 %v1952, %v1953
  %v1955 = vshll.u32 920167782, %v1940
  %v1956 = vshrl.u32 1326507024, %v1941
  %v1957 = vor.u32 %v1955, %v1956
  %vm1958 = vcmp.lt.s32.totalorder %v1939, 1
  %vm1959 = vcmp.lt.s32.totalorder %v1939, 2
  %vm1960 = vcmp.lt.s32.totalorder %v1939, 3
  %vm1961 = vcmp.lt.s32.totalorder %v1939, 4
  %v1962 = vsel %vm1958, %v1942, %v1945
  %v1963 = vsel %vm1961, %v1951, 2102212464
  %v1964 = vsel %vm1960, %v1948, %v1963
  %v1965 = vsel %vm1959, %v1962, %v1964
  %v1966 = vsel %vm1958, %v1945, %v1948
  %v1967 = vsel %vm1961, %v1954, 920167782
  %v1968 = vsel %vm1960, %v1951, %v1967
  %v1969 = vsel %vm1959, %v1966, %v1968
  %v1970 = vsel %vm1958, %v1948, %v1951
  %v1971 = vsel %vm1961, %v1957, 1326507024
  %v1972 = vsel %vm1960, %v1954, %v1971
  %v1973 = vsel %vm1959, %v1970, %v1972
  %v1974 = vshll.u32 %v1934, 8
  %v1975 = vmul.u32.u64.compose %v1974, %v1973
  %v1976 = vextract.low.u32 %v1975
  %v1977 = vextract.high.u32 %v1975
  %v1978 = vmul.u32.u64.compose %v1974, %v1969
  %v1979 = vextract.low.u32 %v1978
  %v1980 = vextract.high.u32 %v1978
  %v1981 = vmul.u32 %v1974, %v1965
  %v1982 = vadd.s32 %v1977, %v1979
  %vm1983 = vc.u32 %v1977, %v1979
  %v1984 = vadd.s32 %v1980, 1
  %v1985 = vsel %vm1983, %v1984, %v1980
  %v1986 = vadd.s32 %v1981, %v1985
  %v1987 = vadd.s32 %v1986, 536870912
  %v1988 = vshrl.u32 %v1987, 30
  %v1989 = vshll.u32 %v1988, 30
  %v1990 = vsub.s32 %v1986, %v1989
  %vm1991 = vcmp.lt.s32.totalorder %v1990, 0
  %v1992 = vsub.s32 0, %v1990
  %v1993 = vsel %vm1991, %v1992, %v1990
  %v1994 = vclz %v1993
  %v1995 = vsub.s32 %v1994, 2
  %vm1996 = vcmp.gt.s32.totalorder 0, %v1995
  %v1997 = vsel %vm1996, 0, %v1995
  %v1998 = vsub.s32 32, %v1997
  %v1999 = vshll.u32 %v1990, %v1997
  %v2000 = vshrl.u32 %v1982, %v1998
  %v2001 = vor.u32 %v1999, %v2000
  %v2002 = vsub.s32 4294967266, %v1997
  %v2003 = vadd.s32 %v2002, 127
  %v2004 = vshll.u32 %v2003, 23
  %v2005 = vor.u32 4788187, %v2004
  %v2006 = vand.u32 2147483647, %v2005
  %v2008 = vcvt.s32.f32 %v2001
  %v2009 = vmul.f32 %v2008, %v2006
  %v2010 = vxor.u32 %v2009, 2147483648
  %v2011 = vsel %vm1928, %v2010, %v2009
  %v2012 = vsub.s32 4, %v1988
  %v2013 = vsel %vm1928, %v2012, %v1988
  %v2014 = vsel %vm1927, %v1189, %v2011
  %v2015 = vsel %vm1927, 0, %v2013
  %v2016 = vcosq.f32.pop %v2014
  %v2017 = vsinq.f32.pop %v2014
  %vm2018 = vweird.f32 %v1189
  %v2019 = vadd.s32 %v2015, 3
  %v2020 = vand.u32 %v2019, 3
  %vm2021 = vcmp.lt.s32.totalorder %v2020, 2
  %vm2022 = vcmp.eq.s32.totalorder %v2020, 0
  %v2023 = vxor.u32 %v2017, 2147483648
  %v2024 = vsel %vm2022, %v2016, %v2023
  %vm2025 = vcmp.eq.s32.totalorder %v2020, 2
  %v2026 = vxor.u32 %v2016, 2147483648
  %v2027 = vsel %vm2025, %v2026, %v2017
  %v2028 = vsel %vm2021, %v2024, %v2027
  %v2029 = vsel %vm2018, nan, %v2028
  %v2030 = vand.u32 2147483647, %v1190
  %vm2031 = vcmp.le.f32.partialorder %v2030, 0.7853982
  %vm2032 = vcmp.lt.s32.totalorder %v1190, 0
  %v2033 = vand.u32 %v1190, 2139095040
  %v2034 = vshrl.u32 %v2033, 23
  %v2035 = vsub.s32 %v2034, 127
  %v2036 = vand.u32 2147483647, %v1190
  %v2037 = vand.u32 %v2036, 8388607
  %v2038 = vor.u32 %v2037, 8388608
  %v2039 = vsub.s32 0, %v2038
  %v2040 = vadd.s32 %v2035, 1
  %vm2041 = vcmp.gt.s32.totalorder %v2040, 0
  %v2042 = vsel %vm2041, %v2040, 0
  %v2043 = vshrl.u32 %v2042, 5
  %v2044 = vand.u32 %v2042, 31
  %v2045 = vsub.s32 32, %v2044
  %v2046 = vshrl.u32 683565275, %v2045
  %v2047 = vshll.u32 683565275, %v2044
  %v2048 = vshrl.u32 2475754826, %v2045
  %v2049 = vor.u32 %v2047, %v2048
  %v2050 = vshll.u32 2475754826, %v2044
  %v2051 = vshrl.u32 2131351028, %v2045
  %v2052 = vor.u32 %v2050, %v2051
  %v2053 = vshll.u32 2131351028, %v2044
  %v2054 = vshrl.u32 2102212464, %v2045
  %v2055 = vor.u32 %v2053, %v2054
  %v2056 = vshll.u32 2102212464, %v2044
  %v2057 = vshrl.u32 920167782, %v2045
  %v2058 = vor.u32 %v2056, %v2057
  %v2059 = vshll.u32 920167782, %v2044
  %v2060 = vshrl.u32 1326507024, %v2045
  %v2061 = vor.u32 %v2059, %v2060
  %vm2062 = vcmp.lt.s32.totalorder %v2043, 1
  %vm2063 = vcmp.lt.s32.totalorder %v2043, 2
  %vm2064 = vcmp.lt.s32.totalorder %v2043, 3
  %vm2065 = vcmp.lt.s32.totalorder %v2043, 4
  %v2066 = vsel %vm2062, %v2046, %v2049
  %v2067 = vsel %vm2065, %v2055, 2102212464
  %v2068 = vsel %vm2064, %v2052, %v2067
  %v2069 = vsel %vm2063, %v2066, %v2068
  %v2070 = vsel %vm2062, %v2049, %v2052
  %v2071 = vsel %vm2065, %v2058, 920167782
  %v2072 = vsel %vm2064, %v2055, %v2071
  %v2073 = vsel %vm2063, %v2070, %v2072
  %v2074 = vsel %vm2062, %v2052, %v2055
  %v2075 = vsel %vm2065, %v2061, 1326507024
  %v2076 = vsel %vm2064, %v2058, %v2075
  %v2077 = vsel %vm2063, %v2074, %v2076
  %v2078 = vshll.u32 %v2038, 8
  %v2079 = vmul.u32.u64.compose %v2078, %v2077
  %v2080 = vextract.low.u32 %v2079
  %v2081 = vextract.high.u32 %v2079
  %v2082 = vmul.u32.u64.compose %v2078, %v2073
  %v2083 = vextract.low.u32 %v2082
  %v2084 = vextract.high.u32 %v2082
  %v2085 = vmul.u32 %v2078, %v2069
  %v2086 = vadd.s32 %v2081, %v2083
  %vm2087 = vc.u32 %v2081, %v2083
  %v2088 = vadd.s32 %v2084, 1
  %v2089 = vsel %vm2087, %v2088, %v2084
  %v2090 = vadd.s32 %v2085, %v2089
  %v2091 = vadd.s32 %v2090, 536870912
  %v2092 = vshrl.u32 %v2091, 30
  %v2093 = vshll.u32 %v2092, 30
  %v2094 = vsub.s32 %v2090, %v2093
  %vm2095 = vcmp.lt.s32.totalorder %v2094, 0
  %v2096 = vsub.s32 0, %v2094
  %v2097 = vsel %vm2095, %v2096, %v2094
  %v2098 = vclz %v2097
  %v2099 = vsub.s32 %v2098, 2
  %vm2100 = vcmp.gt.s32.totalorder 0, %v2099
  %v2101 = vsel %vm2100, 0, %v2099
  %v2102 = vsub.s32 32, %v2101
  %v2103 = vshll.u32 %v2094, %v2101
  %v2104 = vshrl.u32 %v2086, %v2102
  %v2105 = vor.u32 %v2103, %v2104
  %v2106 = vsub.s32 4294967266, %v2101
  %v2107 = vadd.s32 %v2106, 127
  %v2108 = vshll.u32 %v2107, 23
  %v2109 = vor.u32 4788187, %v2108
  %v2110 = vand.u32 2147483647, %v2109
  %v2112 = vcvt.s32.f32 %v2105
  %v2113 = vmul.f32 %v2112, %v2110
  %v2114 = vxor.u32 %v2113, 2147483648
  %v2115 = vsel %vm2032, %v2114, %v2113
  %v2116 = vsub.s32 4, %v2092
  %v2117 = vsel %vm2032, %v2116, %v2092
  %v2118 = vsel %vm2031, %v1190, %v2115
  %v2119 = vsel %vm2031, 0, %v2117
  %v2120 = vcosq.f32.pop %v2118
  %v2121 = vsinq.f32.pop %v2118
  %vm2122 = vweird.f32 %v1190
  %v2123 = vadd.s32 %v2119, 3
  %v2124 = vand.u32 %v2123, 3
  %vm2125 = vcmp.lt.s32.totalorder %v2124, 2
  %vm2126 = vcmp.eq.s32.totalorder %v2124, 0
  %v2127 = vxor.u32 %v2121, 2147483648
  %v2128 = vsel %vm2126, %v2120, %v2127
  %vm2129 = vcmp.eq.s32.totalorder %v2124, 2
  %v2130 = vxor.u32 %v2120, 2147483648
  %v2131 = vsel %vm2129, %v2130, %v2121
  %v2132 = vsel %vm2125, %v2128, %v2131
  %v2133 = vsel %vm2122, nan, %v2132
  %v2134 = vand.u32 2147483647, %v1191
  %vm2135 = vcmp.le.f32.partialorder %v2134, 0.7853982
  %vm2136 = vcmp.lt.s32.totalorder %v1191, 0
  %v2137 = vand.u32 %v1191, 2139095040
  %v2138 = vshrl.u32 %v2137, 23
  %v2139 = vsub.s32 %v2138, 127
  %v2140 = vand.u32 2147483647, %v1191
  %v2141 = vand.u32 %v2140, 8388607
  %v2142 = vor.u32 %v2141, 8388608
  %v2143 = vsub.s32 0, %v2142
  %v2144 = vadd.s32 %v2139, 1
  %vm2145 = vcmp.gt.s32.totalorder %v2144, 0
  %v2146 = vsel %vm2145, %v2144, 0
  %v2147 = vshrl.u32 %v2146, 5
  %v2148 = vand.u32 %v2146, 31
  %v2149 = vsub.s32 32, %v2148
  %v2150 = vshrl.u32 683565275, %v2149
  %v2151 = vshll.u32 683565275, %v2148
  %v2152 = vshrl.u32 2475754826, %v2149
  %v2153 = vor.u32 %v2151, %v2152
  %v2154 = vshll.u32 2475754826, %v2148
  %v2155 = vshrl.u32 2131351028, %v2149
  %v2156 = vor.u32 %v2154, %v2155
  %v2157 = vshll.u32 2131351028, %v2148
  %v2158 = vshrl.u32 2102212464, %v2149
  %v2159 = vor.u32 %v2157, %v2158
  %v2160 = vshll.u32 2102212464, %v2148
  %v2161 = vshrl.u32 920167782, %v2149
  %v2162 = vor.u32 %v2160, %v2161
  %v2163 = vshll.u32 920167782, %v2148
  %v2164 = vshrl.u32 1326507024, %v2149
  %v2165 = vor.u32 %v2163, %v2164
  %vm2166 = vcmp.lt.s32.totalorder %v2147, 1
  %vm2167 = vcmp.lt.s32.totalorder %v2147, 2
  %vm2168 = vcmp.lt.s32.totalorder %v2147, 3
  %vm2169 = vcmp.lt.s32.totalorder %v2147, 4
  %v2170 = vsel %vm2166, %v2150, %v2153
  %v2171 = vsel %vm2169, %v2159, 2102212464
  %v2172 = vsel %vm2168, %v2156, %v2171
  %v2173 = vsel %vm2167, %v2170, %v2172
  %v2174 = vsel %vm2166, %v2153, %v2156
  %v2175 = vsel %vm2169, %v2162, 920167782
  %v2176 = vsel %vm2168, %v2159, %v2175
  %v2177 = vsel %vm2167, %v2174, %v2176
  %v2178 = vsel %vm2166, %v2156, %v2159
  %v2179 = vsel %vm2169, %v2165, 1326507024
  %v2180 = vsel %vm2168, %v2162, %v2179
  %v2181 = vsel %vm2167, %v2178, %v2180
  %v2182 = vshll.u32 %v2142, 8
  %v2183 = vmul.u32.u64.compose %v2182, %v2181
  %v2184 = vextract.low.u32 %v2183
  %v2185 = vextract.high.u32 %v2183
  %v2186 = vmul.u32.u64.compose %v2182, %v2177
  %v2187 = vextract.low.u32 %v2186
  %v2188 = vextract.high.u32 %v2186
  %v2189 = vmul.u32 %v2182, %v2173
  %v2190 = vadd.s32 %v2185, %v2187
  %vm2191 = vc.u32 %v2185, %v2187
  %v2192 = vadd.s32 %v2188, 1
  %v2193 = vsel %vm2191, %v2192, %v2188
  %v2194 = vadd.s32 %v2189, %v2193
  %v2195 = vadd.s32 %v2194, 536870912
  %v2196 = vshrl.u32 %v2195, 30
  %v2197 = vshll.u32 %v2196, 30
  %v2198 = vsub.s32 %v2194, %v2197
  %vm2199 = vcmp.lt.s32.totalorder %v2198, 0
  %v2200 = vsub.s32 0, %v2198
  %v2201 = vsel %vm2199, %v2200, %v2198
  %v2202 = vclz %v2201
  %v2203 = vsub.s32 %v2202, 2
  %vm2204 = vcmp.gt.s32.totalorder 0, %v2203
  %v2205 = vsel %vm2204, 0, %v2203
  %v2206 = vsub.s32 32, %v2205
  %v2207 = vshll.u32 %v2198, %v2205
  %v2208 = vshrl.u32 %v2190, %v2206
  %v2209 = vor.u32 %v2207, %v2208
  %v2210 = vsub.s32 4294967266, %v2205
  %v2211 = vadd.s32 %v2210, 127
  %v2212 = vshll.u32 %v2211, 23
  %v2213 = vor.u32 4788187, %v2212
  %v2214 = vand.u32 2147483647, %v2213
  %v2216 = vcvt.s32.f32 %v2209
  %v2217 = vmul.f32 %v2216, %v2214
  %v2218 = vxor.u32 %v2217, 2147483648
  %v2219 = vsel %vm2136, %v2218, %v2217
  %v2220 = vsub.s32 4, %v2196
  %v2221 = vsel %vm2136, %v2220, %v2196
  %v2222 = vsel %vm2135, %v1191, %v2219
  %v2223 = vsel %vm2135, 0, %v2221
  %v2224 = vcosq.f32.pop %v2222
  %v2225 = vsinq.f32.pop %v2222
  %vm2226 = vweird.f32 %v1191
  %v2227 = vadd.s32 %v2223, 3
  %v2228 = vand.u32 %v2227, 3
  %vm2229 = vcmp.lt.s32.totalorder %v2228, 2
  %vm2230 = vcmp.eq.s32.totalorder %v2228, 0
  %v2231 = vxor.u32 %v2225, 2147483648
  %v2232 = vsel %vm2230, %v2224, %v2231
  %vm2233 = vcmp.eq.s32.totalorder %v2228, 2
  %v2234 = vxor.u32 %v2224, 2147483648
  %v2235 = vsel %vm2233, %v2234, %v2225
  %v2236 = vsel %vm2229, %v2232, %v2235
  %v2237 = vsel %vm2226, nan, %v2236
  %v2238 = vand.u32 2147483647, %v1192
  %vm2239 = vcmp.le.f32.partialorder %v2238, 0.7853982
  %vm2240 = vcmp.lt.s32.totalorder %v1192, 0
  %v2241 = vand.u32 %v1192, 2139095040
  %v2242 = vshrl.u32 %v2241, 23
  %v2243 = vsub.s32 %v2242, 127
  %v2244 = vand.u32 2147483647, %v1192
  %v2245 = vand.u32 %v2244, 8388607
  %v2246 = vor.u32 %v2245, 8388608
  %v2247 = vsub.s32 0, %v2246
  %v2248 = vadd.s32 %v2243, 1
  %vm2249 = vcmp.gt.s32.totalorder %v2248, 0
  %v2250 = vsel %vm2249, %v2248, 0
  %v2251 = vshrl.u32 %v2250, 5
  %v2252 = vand.u32 %v2250, 31
  %v2253 = vsub.s32 32, %v2252
  %v2254 = vshrl.u32 683565275, %v2253
  %v2255 = vshll.u32 683565275, %v2252
  %v2256 = vshrl.u32 2475754826, %v2253
  %v2257 = vor.u32 %v2255, %v2256
  %v2258 = vshll.u32 2475754826, %v2252
  %v2259 = vshrl.u32 2131351028, %v2253
  %v2260 = vor.u32 %v2258, %v2259
  %v2261 = vshll.u32 2131351028, %v2252
  %v2262 = vshrl.u32 2102212464, %v2253
  %v2263 = vor.u32 %v2261, %v2262
  %v2264 = vshll.u32 2102212464, %v2252
  %v2265 = vshrl.u32 920167782, %v2253
  %v2266 = vor.u32 %v2264, %v2265
  %v2267 = vshll.u32 920167782, %v2252
  %v2268 = vshrl.u32 1326507024, %v2253
  %v2269 = vor.u32 %v2267, %v2268
  %vm2270 = vcmp.lt.s32.totalorder %v2251, 1
  %vm2271 = vcmp.lt.s32.totalorder %v2251, 2
  %vm2272 = vcmp.lt.s32.totalorder %v2251, 3
  %vm2273 = vcmp.lt.s32.totalorder %v2251, 4
  %v2274 = vsel %vm2270, %v2254, %v2257
  %v2275 = vsel %vm2273, %v2263, 2102212464
  %v2276 = vsel %vm2272, %v2260, %v2275
  %v2277 = vsel %vm2271, %v2274, %v2276
  %v2278 = vsel %vm2270, %v2257, %v2260
  %v2279 = vsel %vm2273, %v2266, 920167782
  %v2280 = vsel %vm2272, %v2263, %v2279
  %v2281 = vsel %vm2271, %v2278, %v2280
  %v2282 = vsel %vm2270, %v2260, %v2263
  %v2283 = vsel %vm2273, %v2269, 1326507024
  %v2284 = vsel %vm2272, %v2266, %v2283
  %v2285 = vsel %vm2271, %v2282, %v2284
  %v2286 = vshll.u32 %v2246, 8
  %v2287 = vmul.u32.u64.compose %v2286, %v2285
  %v2288 = vextract.low.u32 %v2287
  %v2289 = vextract.high.u32 %v2287
  %v2290 = vmul.u32.u64.compose %v2286, %v2281
  %v2291 = vextract.low.u32 %v2290
  %v2292 = vextract.high.u32 %v2290
  %v2293 = vmul.u32 %v2286, %v2277
  %v2294 = vadd.s32 %v2289, %v2291
  %vm2295 = vc.u32 %v2289, %v2291
  %v2296 = vadd.s32 %v2292, 1
  %v2297 = vsel %vm2295, %v2296, %v2292
  %v2298 = vadd.s32 %v2293, %v2297
  %v2299 = vadd.s32 %v2298, 536870912
  %v2300 = vshrl.u32 %v2299, 30
  %v2301 = vshll.u32 %v2300, 30
  %v2302 = vsub.s32 %v2298, %v2301
  %vm2303 = vcmp.lt.s32.totalorder %v2302, 0
  %v2304 = vsub.s32 0, %v2302
  %v2305 = vsel %vm2303, %v2304, %v2302
  %v2306 = vclz %v2305
  %v2307 = vsub.s32 %v2306, 2
  %vm2308 = vcmp.gt.s32.totalorder 0, %v2307
  %v2309 = vsel %vm2308, 0, %v2307
  %v2310 = vsub.s32 32, %v2309
  %v2311 = vshll.u32 %v2302, %v2309
  %v2312 = vshrl.u32 %v2294, %v2310
  %v2313 = vor.u32 %v2311, %v2312
  %v2314 = vsub.s32 4294967266, %v2309
  %v2315 = vadd.s32 %v2314, 127
  %v2316 = vshll.u32 %v2315, 23
  %v2317 = vor.u32 4788187, %v2316
  %v2318 = vand.u32 2147483647, %v2317
  %v2320 = vcvt.s32.f32 %v2313
  %v2321 = vmul.f32 %v2320, %v2318
  %v2322 = vxor.u32 %v2321, 2147483648
  %v2323 = vsel %vm2240, %v2322, %v2321
  %v2324 = vsub.s32 4, %v2300
  %v2325 = vsel %vm2240, %v2324, %v2300
  %v2326 = vsel %vm2239, %v1192, %v2323
  %v2327 = vsel %vm2239, 0, %v2325
  %v2328 = vcosq.f32.pop %v2326
  %v2329 = vsinq.f32.pop %v2326
  %vm2330 = vweird.f32 %v1192
  %v2331 = vadd.s32 %v2327, 3
  %v2332 = vand.u32 %v2331, 3
  %vm2333 = vcmp.lt.s32.totalorder %v2332, 2
  %vm2334 = vcmp.eq.s32.totalorder %v2332, 0
  %v2335 = vxor.u32 %v2329, 2147483648
  %v2336 = vsel %vm2334, %v2328, %v2335
  %vm2337 = vcmp.eq.s32.totalorder %v2332, 2
  %v2338 = vxor.u32 %v2328, 2147483648
  %v2339 = vsel %vm2337, %v2338, %v2329
  %v2340 = vsel %vm2333, %v2336, %v2339
  %v2341 = vsel %vm2330, nan, %v2340
  %v2342 = vand.u32 2147483647, %v1193
  %vm2343 = vcmp.le.f32.partialorder %v2342, 0.7853982
  %vm2344 = vcmp.lt.s32.totalorder %v1193, 0
  %v2345 = vand.u32 %v1193, 2139095040
  %v2346 = vshrl.u32 %v2345, 23
  %v2347 = vsub.s32 %v2346, 127
  %v2348 = vand.u32 2147483647, %v1193
  %v2349 = vand.u32 %v2348, 8388607
  %v2350 = vor.u32 %v2349, 8388608
  %v2351 = vsub.s32 0, %v2350
  %v2352 = vadd.s32 %v2347, 1
  %vm2353 = vcmp.gt.s32.totalorder %v2352, 0
  %v2354 = vsel %vm2353, %v2352, 0
  %v2355 = vshrl.u32 %v2354, 5
  %v2356 = vand.u32 %v2354, 31
  %v2357 = vsub.s32 32, %v2356
  %v2358 = vshrl.u32 683565275, %v2357
  %v2359 = vshll.u32 683565275, %v2356
  %v2360 = vshrl.u32 2475754826, %v2357
  %v2361 = vor.u32 %v2359, %v2360
  %v2362 = vshll.u32 2475754826, %v2356
  %v2363 = vshrl.u32 2131351028, %v2357
  %v2364 = vor.u32 %v2362, %v2363
  %v2365 = vshll.u32 2131351028, %v2356
  %v2366 = vshrl.u32 2102212464, %v2357
  %v2367 = vor.u32 %v2365, %v2366
  %v2368 = vshll.u32 2102212464, %v2356
  %v2369 = vshrl.u32 920167782, %v2357
  %v2370 = vor.u32 %v2368, %v2369
  %v2371 = vshll.u32 920167782, %v2356
  %v2372 = vshrl.u32 1326507024, %v2357
  %v2373 = vor.u32 %v2371, %v2372
  %vm2374 = vcmp.lt.s32.totalorder %v2355, 1
  %vm2375 = vcmp.lt.s32.totalorder %v2355, 2
  %vm2376 = vcmp.lt.s32.totalorder %v2355, 3
  %vm2377 = vcmp.lt.s32.totalorder %v2355, 4
  %v2378 = vsel %vm2374, %v2358, %v2361
  %v2379 = vsel %vm2377, %v2367, 2102212464
  %v2380 = vsel %vm2376, %v2364, %v2379
  %v2381 = vsel %vm2375, %v2378, %v2380
  %v2382 = vsel %vm2374, %v2361, %v2364
  %v2383 = vsel %vm2377, %v2370, 920167782
  %v2384 = vsel %vm2376, %v2367, %v2383
  %v2385 = vsel %vm2375, %v2382, %v2384
  %v2386 = vsel %vm2374, %v2364, %v2367
  %v2387 = vsel %vm2377, %v2373, 1326507024
  %v2388 = vsel %vm2376, %v2370, %v2387
  %v2389 = vsel %vm2375, %v2386, %v2388
  %v2390 = vshll.u32 %v2350, 8
  %v2391 = vmul.u32.u64.compose %v2390, %v2389
  %v2392 = vextract.low.u32 %v2391
  %v2393 = vextract.high.u32 %v2391
  %v2394 = vmul.u32.u64.compose %v2390, %v2385
  %v2395 = vextract.low.u32 %v2394
  %v2396 = vextract.high.u32 %v2394
  %v2397 = vmul.u32 %v2390, %v2381
  %v2398 = vadd.s32 %v2393, %v2395
  %vm2399 = vc.u32 %v2393, %v2395
  %v2400 = vadd.s32 %v2396, 1
  %v2401 = vsel %vm2399, %v2400, %v2396
  %v2402 = vadd.s32 %v2397, %v2401
  %v2403 = vadd.s32 %v2402, 536870912
  %v2404 = vshrl.u32 %v2403, 30
  %v2405 = vshll.u32 %v2404, 30
  %v2406 = vsub.s32 %v2402, %v2405
  %vm2407 = vcmp.lt.s32.totalorder %v2406, 0
  %v2408 = vsub.s32 0, %v2406
  %v2409 = vsel %vm2407, %v2408, %v2406
  %v2410 = vclz %v2409
  %v2411 = vsub.s32 %v2410, 2
  %vm2412 = vcmp.gt.s32.totalorder 0, %v2411
  %v2413 = vsel %vm2412, 0, %v2411
  %v2414 = vsub.s32 32, %v2413
  %v2415 = vshll.u32 %v2406, %v2413
  %v2416 = vshrl.u32 %v2398, %v2414
  %v2417 = vor.u32 %v2415, %v2416
  %v2418 = vsub.s32 4294967266, %v2413
  %v2419 = vadd.s32 %v2418, 127
  %v2420 = vshll.u32 %v2419, 23
  %v2421 = vor.u32 4788187, %v2420
  %v2422 = vand.u32 2147483647, %v2421
  %v2424 = vcvt.s32.f32 %v2417
  %v2425 = vmul.f32 %v2424, %v2422
  %v2426 = vxor.u32 %v2425, 2147483648
  %v2427 = vsel %vm2344, %v2426, %v2425
  %v2428 = vsub.s32 4, %v2404
  %v2429 = vsel %vm2344, %v2428, %v2404
  %v2430 = vsel %vm2343, %v1193, %v2427
  %v2431 = vsel %vm2343, 0, %v2429
  %v2432 = vcosq.f32.pop %v2430
  %v2433 = vsinq.f32.pop %v2430
  %vm2434 = vweird.f32 %v1193
  %v2435 = vadd.s32 %v2431, 3
  %v2436 = vand.u32 %v2435, 3
  %vm2437 = vcmp.lt.s32.totalorder %v2436, 2
  %vm2438 = vcmp.eq.s32.totalorder %v2436, 0
  %v2439 = vxor.u32 %v2433, 2147483648
  %v2440 = vsel %vm2438, %v2432, %v2439
  %vm2441 = vcmp.eq.s32.totalorder %v2436, 2
  %v2442 = vxor.u32 %v2432, 2147483648
  %v2443 = vsel %vm2441, %v2442, %v2433
  %v2444 = vsel %vm2437, %v2440, %v2443
  %v2445 = vsel %vm2434, nan, %v2444
  %v2446 = vand.u32 2147483647, %v1194
  %vm2447 = vcmp.le.f32.partialorder %v2446, 0.7853982
  %vm2448 = vcmp.lt.s32.totalorder %v1194, 0
  %v2449 = vand.u32 %v1194, 2139095040
  %v2450 = vshrl.u32 %v2449, 23
  %v2451 = vsub.s32 %v2450, 127
  %v2452 = vand.u32 2147483647, %v1194
  %v2453 = vand.u32 %v2452, 8388607
  %v2454 = vor.u32 %v2453, 8388608
  %v2455 = vsub.s32 0, %v2454
  %v2456 = vadd.s32 %v2451, 1
  %vm2457 = vcmp.gt.s32.totalorder %v2456, 0
  %v2458 = vsel %vm2457, %v2456, 0
  %v2459 = vshrl.u32 %v2458, 5
  %v2460 = vand.u32 %v2458, 31
  %v2461 = vsub.s32 32, %v2460
  %v2462 = vshrl.u32 683565275, %v2461
  %v2463 = vshll.u32 683565275, %v2460
  %v2464 = vshrl.u32 2475754826, %v2461
  %v2465 = vor.u32 %v2463, %v2464
  %v2466 = vshll.u32 2475754826, %v2460
  %v2467 = vshrl.u32 2131351028, %v2461
  %v2468 = vor.u32 %v2466, %v2467
  %v2469 = vshll.u32 2131351028, %v2460
  %v2470 = vshrl.u32 2102212464, %v2461
  %v2471 = vor.u32 %v2469, %v2470
  %v2472 = vshll.u32 2102212464, %v2460
  %v2473 = vshrl.u32 920167782, %v2461
  %v2474 = vor.u32 %v2472, %v2473
  %v2475 = vshll.u32 920167782, %v2460
  %v2476 = vshrl.u32 1326507024, %v2461
  %v2477 = vor.u32 %v2475, %v2476
  %vm2478 = vcmp.lt.s32.totalorder %v2459, 1
  %vm2479 = vcmp.lt.s32.totalorder %v2459, 2
  %vm2480 = vcmp.lt.s32.totalorder %v2459, 3
  %vm2481 = vcmp.lt.s32.totalorder %v2459, 4
  %v2482 = vsel %vm2478, %v2462, %v2465
  %v2483 = vsel %vm2481, %v2471, 2102212464
  %v2484 = vsel %vm2480, %v2468, %v2483
  %v2485 = vsel %vm2479, %v2482, %v2484
  %v2486 = vsel %vm2478, %v2465, %v2468
  %v2487 = vsel %vm2481, %v2474, 920167782
  %v2488 = vsel %vm2480, %v2471, %v2487
  %v2489 = vsel %vm2479, %v2486, %v2488
  %v2490 = vsel %vm2478, %v2468, %v2471
  %v2491 = vsel %vm2481, %v2477, 1326507024
  %v2492 = vsel %vm2480, %v2474, %v2491
  %v2493 = vsel %vm2479, %v2490, %v2492
  %v2494 = vshll.u32 %v2454, 8
  %v2495 = vmul.u32.u64.compose %v2494, %v2493
  %v2496 = vextract.low.u32 %v2495
  %v2497 = vextract.high.u32 %v2495
  %v2498 = vmul.u32.u64.compose %v2494, %v2489
  %v2499 = vextract.low.u32 %v2498
  %v2500 = vextract.high.u32 %v2498
  %v2501 = vmul.u32 %v2494, %v2485
  %v2502 = vadd.s32 %v2497, %v2499
  %vm2503 = vc.u32 %v2497, %v2499
  %v2504 = vadd.s32 %v2500, 1
  %v2505 = vsel %vm2503, %v2504, %v2500
  %v2506 = vadd.s32 %v2501, %v2505
  %v2507 = vadd.s32 %v2506, 536870912
  %v2508 = vshrl.u32 %v2507, 30
  %v2509 = vshll.u32 %v2508, 30
  %v2510 = vsub.s32 %v2506, %v2509
  %vm2511 = vcmp.lt.s32.totalorder %v2510, 0
  %v2512 = vsub.s32 0, %v2510
  %v2513 = vsel %vm2511, %v2512, %v2510
  %v2514 = vclz %v2513
  %v2515 = vsub.s32 %v2514, 2
  %vm2516 = vcmp.gt.s32.totalorder 0, %v2515
  %v2517 = vsel %vm2516, 0, %v2515
  %v2518 = vsub.s32 32, %v2517
  %v2519 = vshll.u32 %v2510, %v2517
  %v2520 = vshrl.u32 %v2502, %v2518
  %v2521 = vor.u32 %v2519, %v2520
  %v2522 = vsub.s32 4294967266, %v2517
  %v2523 = vadd.s32 %v2522, 127
  %v2524 = vshll.u32 %v2523, 23
  %v2525 = vor.u32 4788187, %v2524
  %v2526 = vand.u32 2147483647, %v2525
  %v2528 = vcvt.s32.f32 %v2521
  %v2529 = vmul.f32 %v2528, %v2526
  %v2530 = vxor.u32 %v2529, 2147483648
  %v2531 = vsel %vm2448, %v2530, %v2529
  %v2532 = vsub.s32 4, %v2508
  %v2533 = vsel %vm2448, %v2532, %v2508
  %v2534 = vsel %vm2447, %v1194, %v2531
  %v2535 = vsel %vm2447, 0, %v2533
  %v2536 = vcosq.f32.pop %v2534
  %v2537 = vsinq.f32.pop %v2534
  %vm2538 = vweird.f32 %v1194
  %v2539 = vadd.s32 %v2535, 3
  %v2540 = vand.u32 %v2539, 3
  %vm2541 = vcmp.lt.s32.totalorder %v2540, 2
  %vm2542 = vcmp.eq.s32.totalorder %v2540, 0
  %v2543 = vxor.u32 %v2537, 2147483648
  %v2544 = vsel %vm2542, %v2536, %v2543
  %vm2545 = vcmp.eq.s32.totalorder %v2540, 2
  %v2546 = vxor.u32 %v2536, 2147483648
  %v2547 = vsel %vm2545, %v2546, %v2537
  %v2548 = vsel %vm2541, %v2544, %v2547
  %v2549 = vsel %vm2538, nan, %v2548
  %v2550 = vand.u32 2147483647, %v1195
  %vm2551 = vcmp.le.f32.partialorder %v2550, 0.7853982
  %vm2552 = vcmp.lt.s32.totalorder %v1195, 0
  %v2553 = vand.u32 %v1195, 2139095040
  %v2554 = vshrl.u32 %v2553, 23
  %v2555 = vsub.s32 %v2554, 127
  %v2556 = vand.u32 2147483647, %v1195
  %v2557 = vand.u32 %v2556, 8388607
  %v2558 = vor.u32 %v2557, 8388608
  %v2559 = vsub.s32 0, %v2558
  %v2560 = vadd.s32 %v2555, 1
  %vm2561 = vcmp.gt.s32.totalorder %v2560, 0
  %v2562 = vsel %vm2561, %v2560, 0
  %v2563 = vshrl.u32 %v2562, 5
  %v2564 = vand.u32 %v2562, 31
  %v2565 = vsub.s32 32, %v2564
  %v2566 = vshrl.u32 683565275, %v2565
  %v2567 = vshll.u32 683565275, %v2564
  %v2568 = vshrl.u32 2475754826, %v2565
  %v2569 = vor.u32 %v2567, %v2568
  %v2570 = vshll.u32 2475754826, %v2564
  %v2571 = vshrl.u32 2131351028, %v2565
  %v2572 = vor.u32 %v2570, %v2571
  %v2573 = vshll.u32 2131351028, %v2564
  %v2574 = vshrl.u32 2102212464, %v2565
  %v2575 = vor.u32 %v2573, %v2574
  %v2576 = vshll.u32 2102212464, %v2564
  %v2577 = vshrl.u32 920167782, %v2565
  %v2578 = vor.u32 %v2576, %v2577
  %v2579 = vshll.u32 920167782, %v2564
  %v2580 = vshrl.u32 1326507024, %v2565
  %v2581 = vor.u32 %v2579, %v2580
  %vm2582 = vcmp.lt.s32.totalorder %v2563, 1
  %vm2583 = vcmp.lt.s32.totalorder %v2563, 2
  %vm2584 = vcmp.lt.s32.totalorder %v2563, 3
  %vm2585 = vcmp.lt.s32.totalorder %v2563, 4
  %v2586 = vsel %vm2582, %v2566, %v2569
  %v2587 = vsel %vm2585, %v2575, 2102212464
  %v2588 = vsel %vm2584, %v2572, %v2587
  %v2589 = vsel %vm2583, %v2586, %v2588
  %v2590 = vsel %vm2582, %v2569, %v2572
  %v2591 = vsel %vm2585, %v2578, 920167782
  %v2592 = vsel %vm2584, %v2575, %v2591
  %v2593 = vsel %vm2583, %v2590, %v2592
  %v2594 = vsel %vm2582, %v2572, %v2575
  %v2595 = vsel %vm2585, %v2581, 1326507024
  %v2596 = vsel %vm2584, %v2578, %v2595
  %v2597 = vsel %vm2583, %v2594, %v2596
  %v2598 = vshll.u32 %v2558, 8
  %v2599 = vmul.u32.u64.compose %v2598, %v2597
  %v2600 = vextract.low.u32 %v2599
  %v2601 = vextract.high.u32 %v2599
  %v2602 = vmul.u32.u64.compose %v2598, %v2593
  %v2603 = vextract.low.u32 %v2602
  %v2604 = vextract.high.u32 %v2602
  %v2605 = vmul.u32 %v2598, %v2589
  %v2606 = vadd.s32 %v2601, %v2603
  %vm2607 = vc.u32 %v2601, %v2603
  %v2608 = vadd.s32 %v2604, 1
  %v2609 = vsel %vm2607, %v2608, %v2604
  %v2610 = vadd.s32 %v2605, %v2609
  %v2611 = vadd.s32 %v2610, 536870912
  %v2612 = vshrl.u32 %v2611, 30
  %v2613 = vshll.u32 %v2612, 30
  %v2614 = vsub.s32 %v2610, %v2613
  %vm2615 = vcmp.lt.s32.totalorder %v2614, 0
  %v2616 = vsub.s32 0, %v2614
  %v2617 = vsel %vm2615, %v2616, %v2614
  %v2618 = vclz %v2617
  %v2619 = vsub.s32 %v2618, 2
  %vm2620 = vcmp.gt.s32.totalorder 0, %v2619
  %v2621 = vsel %vm2620, 0, %v2619
  %v2622 = vsub.s32 32, %v2621
  %v2623 = vshll.u32 %v2614, %v2621
  %v2624 = vshrl.u32 %v2606, %v2622
  %v2625 = vor.u32 %v2623, %v2624
  %v2626 = vsub.s32 4294967266, %v2621
  %v2627 = vadd.s32 %v2626, 127
  %v2628 = vshll.u32 %v2627, 23
  %v2629 = vor.u32 4788187, %v2628
  %v2630 = vand.u32 2147483647, %v2629
  %v2632 = vcvt.s32.f32 %v2625
  %v2633 = vmul.f32 %v2632, %v2630
  %v2634 = vxor.u32 %v2633, 2147483648
  %v2635 = vsel %vm2552, %v2634, %v2633
  %v2636 = vsub.s32 4, %v2612
  %v2637 = vsel %vm2552, %v2636, %v2612
  %v2638 = vsel %vm2551, %v1195, %v2635
  %v2639 = vsel %vm2551, 0, %v2637
  %v2640 = vcosq.f32.pop %v2638
  %v2641 = vsinq.f32.pop %v2638
  %vm2642 = vweird.f32 %v1195
  %v2643 = vadd.s32 %v2639, 3
  %v2644 = vand.u32 %v2643, 3
  %vm2645 = vcmp.lt.s32.totalorder %v2644, 2
  %vm2646 = vcmp.eq.s32.totalorder %v2644, 0
  %v2647 = vxor.u32 %v2641, 2147483648
  %v2648 = vsel %vm2646, %v2640, %v2647
  %vm2649 = vcmp.eq.s32.totalorder %v2644, 2
  %v2650 = vxor.u32 %v2640, 2147483648
  %v2651 = vsel %vm2649, %v2650, %v2641
  %v2652 = vsel %vm2645, %v2648, %v2651
  %v2653 = vsel %vm2642, nan, %v2652
  %v2654 = vand.u32 2147483647, %v1196
  %vm2655 = vcmp.le.f32.partialorder %v2654, 0.7853982
  %vm2656 = vcmp.lt.s32.totalorder %v1196, 0
  %v2657 = vand.u32 %v1196, 2139095040
  %v2658 = vshrl.u32 %v2657, 23
  %v2659 = vsub.s32 %v2658, 127
  %v2660 = vand.u32 2147483647, %v1196
  %v2661 = vand.u32 %v2660, 8388607
  %v2662 = vor.u32 %v2661, 8388608
  %v2663 = vsub.s32 0, %v2662
  %v2664 = vadd.s32 %v2659, 1
  %vm2665 = vcmp.gt.s32.totalorder %v2664, 0
  %v2666 = vsel %vm2665, %v2664, 0
  %v2667 = vshrl.u32 %v2666, 5
  %v2668 = vand.u32 %v2666, 31
  %v2669 = vsub.s32 32, %v2668
  %v2670 = vshrl.u32 683565275, %v2669
  %v2671 = vshll.u32 683565275, %v2668
  %v2672 = vshrl.u32 2475754826, %v2669
  %v2673 = vor.u32 %v2671, %v2672
  %v2674 = vshll.u32 2475754826, %v2668
  %v2675 = vshrl.u32 2131351028, %v2669
  %v2676 = vor.u32 %v2674, %v2675
  %v2677 = vshll.u32 2131351028, %v2668
  %v2678 = vshrl.u32 2102212464, %v2669
  %v2679 = vor.u32 %v2677, %v2678
  %v2680 = vshll.u32 2102212464, %v2668
  %v2681 = vshrl.u32 920167782, %v2669
  %v2682 = vor.u32 %v2680, %v2681
  %v2683 = vshll.u32 920167782, %v2668
  %v2684 = vshrl.u32 1326507024, %v2669
  %v2685 = vor.u32 %v2683, %v2684
  %vm2686 = vcmp.lt.s32.totalorder %v2667, 1
  %vm2687 = vcmp.lt.s32.totalorder %v2667, 2
  %vm2688 = vcmp.lt.s32.totalorder %v2667, 3
  %vm2689 = vcmp.lt.s32.totalorder %v2667, 4
  %v2690 = vsel %vm2686, %v2670, %v2673
  %v2691 = vsel %vm2689, %v2679, 2102212464
  %v2692 = vsel %vm2688, %v2676, %v2691
  %v2693 = vsel %vm2687, %v2690, %v2692
  %v2694 = vsel %vm2686, %v2673, %v2676
  %v2695 = vsel %vm2689, %v2682, 920167782
  %v2696 = vsel %vm2688, %v2679, %v2695
  %v2697 = vsel %vm2687, %v2694, %v2696
  %v2698 = vsel %vm2686, %v2676, %v2679
  %v2699 = vsel %vm2689, %v2685, 1326507024
  %v2700 = vsel %vm2688, %v2682, %v2699
  %v2701 = vsel %vm2687, %v2698, %v2700
  %v2702 = vshll.u32 %v2662, 8
  %v2703 = vmul.u32.u64.compose %v2702, %v2701
  %v2704 = vextract.low.u32 %v2703
  %v2705 = vextract.high.u32 %v2703
  %v2706 = vmul.u32.u64.compose %v2702, %v2697
  %v2707 = vextract.low.u32 %v2706
  %v2708 = vextract.high.u32 %v2706
  %v2709 = vmul.u32 %v2702, %v2693
  %v2710 = vadd.s32 %v2705, %v2707
  %vm2711 = vc.u32 %v2705, %v2707
  %v2712 = vadd.s32 %v2708, 1
  %v2713 = vsel %vm2711, %v2712, %v2708
  %v2714 = vadd.s32 %v2709, %v2713
  %v2715 = vadd.s32 %v2714, 536870912
  %v2716 = vshrl.u32 %v2715, 30
  %v2717 = vshll.u32 %v2716, 30
  %v2718 = vsub.s32 %v2714, %v2717
  %vm2719 = vcmp.lt.s32.totalorder %v2718, 0
  %v2720 = vsub.s32 0, %v2718
  %v2721 = vsel %vm2719, %v2720, %v2718
  %v2722 = vclz %v2721
  %v2723 = vsub.s32 %v2722, 2
  %vm2724 = vcmp.gt.s32.totalorder 0, %v2723
  %v2725 = vsel %vm2724, 0, %v2723
  %v2726 = vsub.s32 32, %v2725
  %v2727 = vshll.u32 %v2718, %v2725
  %v2728 = vshrl.u32 %v2710, %v2726
  %v2729 = vor.u32 %v2727, %v2728
  %v2730 = vsub.s32 4294967266, %v2725
  %v2731 = vadd.s32 %v2730, 127
  %v2732 = vshll.u32 %v2731, 23
  %v2733 = vor.u32 4788187, %v2732
  %v2734 = vand.u32 2147483647, %v2733
  %v2736 = vcvt.s32.f32 %v2729
  %v2737 = vmul.f32 %v2736, %v2734
  %v2738 = vxor.u32 %v2737, 2147483648
  %v2739 = vsel %vm2656, %v2738, %v2737
  %v2740 = vsub.s32 4, %v2716
  %v2741 = vsel %vm2656, %v2740, %v2716
  %v2742 = vsel %vm2655, %v1196, %v2739
  %v2743 = vsel %vm2655, 0, %v2741
  %v2744 = vcosq.f32.pop %v2742
  %v2745 = vsinq.f32.pop %v2742
  %vm2746 = vweird.f32 %v1196
  %v2747 = vadd.s32 %v2743, 3
  %v2748 = vand.u32 %v2747, 3
  %vm2749 = vcmp.lt.s32.totalorder %v2748, 2
  %vm2750 = vcmp.eq.s32.totalorder %v2748, 0
  %v2751 = vxor.u32 %v2745, 2147483648
  %v2752 = vsel %vm2750, %v2744, %v2751
  %vm2753 = vcmp.eq.s32.totalorder %v2748, 2
  %v2754 = vxor.u32 %v2744, 2147483648
  %v2755 = vsel %vm2753, %v2754, %v2745
  %v2756 = vsel %vm2749, %v2752, %v2755
  %v2757 = vsel %vm2746, nan, %v2756
  %v2758 = vand.u32 2147483647, %v1197
  %vm2759 = vcmp.le.f32.partialorder %v2758, 0.7853982
  %vm2760 = vcmp.lt.s32.totalorder %v1197, 0
  %v2761 = vand.u32 %v1197, 2139095040
  %v2762 = vshrl.u32 %v2761, 23
  %v2763 = vsub.s32 %v2762, 127
  %v2764 = vand.u32 2147483647, %v1197
  %v2765 = vand.u32 %v2764, 8388607
  %v2766 = vor.u32 %v2765, 8388608
  %v2767 = vsub.s32 0, %v2766
  %v2768 = vadd.s32 %v2763, 1
  %vm2769 = vcmp.gt.s32.totalorder %v2768, 0
  %v2770 = vsel %vm2769, %v2768, 0
  %v2771 = vshrl.u32 %v2770, 5
  %v2772 = vand.u32 %v2770, 31
  %v2773 = vsub.s32 32, %v2772
  %v2774 = vshrl.u32 683565275, %v2773
  %v2775 = vshll.u32 683565275, %v2772
  %v2776 = vshrl.u32 2475754826, %v2773
  %v2777 = vor.u32 %v2775, %v2776
  %v2778 = vshll.u32 2475754826, %v2772
  %v2779 = vshrl.u32 2131351028, %v2773
  %v2780 = vor.u32 %v2778, %v2779
  %v2781 = vshll.u32 2131351028, %v2772
  %v2782 = vshrl.u32 2102212464, %v2773
  %v2783 = vor.u32 %v2781, %v2782
  %v2784 = vshll.u32 2102212464, %v2772
  %v2785 = vshrl.u32 920167782, %v2773
  %v2786 = vor.u32 %v2784, %v2785
  %v2787 = vshll.u32 920167782, %v2772
  %v2788 = vshrl.u32 1326507024, %v2773
  %v2789 = vor.u32 %v2787, %v2788
  %vm2790 = vcmp.lt.s32.totalorder %v2771, 1
  %vm2791 = vcmp.lt.s32.totalorder %v2771, 2
  %vm2792 = vcmp.lt.s32.totalorder %v2771, 3
  %vm2793 = vcmp.lt.s32.totalorder %v2771, 4
  %v2794 = vsel %vm2790, %v2774, %v2777
  %v2795 = vsel %vm2793, %v2783, 2102212464
  %v2796 = vsel %vm2792, %v2780, %v2795
  %v2797 = vsel %vm2791, %v2794, %v2796
  %v2798 = vsel %vm2790, %v2777, %v2780
  %v2799 = vsel %vm2793, %v2786, 920167782
  %v2800 = vsel %vm2792, %v2783, %v2799
  %v2801 = vsel %vm2791, %v2798, %v2800
  %v2802 = vsel %vm2790, %v2780, %v2783
  %v2803 = vsel %vm2793, %v2789, 1326507024
  %v2804 = vsel %vm2792, %v2786, %v2803
  %v2805 = vsel %vm2791, %v2802, %v2804
  %v2806 = vshll.u32 %v2766, 8
  %v2807 = vmul.u32.u64.compose %v2806, %v2805
  %v2808 = vextract.low.u32 %v2807
  %v2809 = vextract.high.u32 %v2807
  %v2810 = vmul.u32.u64.compose %v2806, %v2801
  %v2811 = vextract.low.u32 %v2810
  %v2812 = vextract.high.u32 %v2810
  %v2813 = vmul.u32 %v2806, %v2797
  %v2814 = vadd.s32 %v2809, %v2811
  %vm2815 = vc.u32 %v2809, %v2811
  %v2816 = vadd.s32 %v2812, 1
  %v2817 = vsel %vm2815, %v2816, %v2812
  %v2818 = vadd.s32 %v2813, %v2817
  %v2819 = vadd.s32 %v2818, 536870912
  %v2820 = vshrl.u32 %v2819, 30
  %v2821 = vshll.u32 %v2820, 30
  %v2822 = vsub.s32 %v2818, %v2821
  %vm2823 = vcmp.lt.s32.totalorder %v2822, 0
  %v2824 = vsub.s32 0, %v2822
  %v2825 = vsel %vm2823, %v2824, %v2822
  %v2826 = vclz %v2825
  %v2827 = vsub.s32 %v2826, 2
  %vm2828 = vcmp.gt.s32.totalorder 0, %v2827
  %v2829 = vsel %vm2828, 0, %v2827
  %v2830 = vsub.s32 32, %v2829
  %v2831 = vshll.u32 %v2822, %v2829
  %v2832 = vshrl.u32 %v2814, %v2830
  %v2833 = vor.u32 %v2831, %v2832
  %v2834 = vsub.s32 4294967266, %v2829
  %v2835 = vadd.s32 %v2834, 127
  %v2836 = vshll.u32 %v2835, 23
  %v2837 = vor.u32 4788187, %v2836
  %v2838 = vand.u32 2147483647, %v2837
  %v2840 = vcvt.s32.f32 %v2833
  %v2841 = vmul.f32 %v2840, %v2838
  %v2842 = vxor.u32 %v2841, 2147483648
  %v2843 = vsel %vm2760, %v2842, %v2841
  %v2844 = vsub.s32 4, %v2820
  %v2845 = vsel %vm2760, %v2844, %v2820
  %v2846 = vsel %vm2759, %v1197, %v2843
  %v2847 = vsel %vm2759, 0, %v2845
  %v2848 = vcosq.f32.pop %v2846
  %v2849 = vsinq.f32.pop %v2846
  %vm2850 = vweird.f32 %v1197
  %v2851 = vadd.s32 %v2847, 3
  %v2852 = vand.u32 %v2851, 3
  %vm2853 = vcmp.lt.s32.totalorder %v2852, 2
  %vm2854 = vcmp.eq.s32.totalorder %v2852, 0
  %v2855 = vxor.u32 %v2849, 2147483648
  %v2856 = vsel %vm2854, %v2848, %v2855
  %vm2857 = vcmp.eq.s32.totalorder %v2852, 2
  %v2858 = vxor.u32 %v2848, 2147483648
  %v2859 = vsel %vm2857, %v2858, %v2849
  %v2860 = vsel %vm2853, %v2856, %v2859
  %v2861 = vsel %vm2850, nan, %v2860
  %v2862 = vlaneseq
  %v2863 = vand.u32 %v2862, 127
  %vm2864 = vcmp.lt.s32.totalorder %v2863, 4
  %v2865 = vsel %vm2864, %v1082, %v1301
  %v2866 = vsel %vm2864, %v1088, %v1405
  %v2867 = vsel %vm2864, %v1094, %v1509
  %v2868 = vsel %vm2864, %v1100, %v1613
  %v2869 = vsel %vm2864, %v1106, %v1717
  %v2870 = vsel %vm2864, %v1112, %v1821
  %v2871 = vsel %vm2864, %v1118, %v1925
  %v2872 = vsel %vm2864, %v1124, %v2029
  %v2873 = vsel %vm2864, %v1130, %v2133
  %v2874 = vsel %vm2864, %v1136, %v2237
  %v2875 = vsel %vm2864, %v1142, %v2341
  %v2876 = vsel %vm2864, %v1148, %v2445
  %v2877 = vsel %vm2864, %v1154, %v2549
  %v2878 = vsel %vm2864, %v1160, %v2653
  %v2879 = vsel %vm2864, %v1166, %v2757
  %v2880 = vsel %vm2864, %v1172, %v2861
  %vm2881 = vcmask 556032
  %2882 = vst.msk [vmem:[%s3] sm:$0xff] %vm2881, %v2865
  %2883 = vst.msk [vmem:[%s3 + $0x8] sm:$0xff] %vm2881, %v2866
  %2884 = vst.msk [vmem:[%s3 + $0x10] sm:$0xff] %vm2881, %v2867
  %2885 = vst.msk [vmem:[%s3 + $0x18] sm:$0xff] %vm2881, %v2868
  %2886 = vst.msk [vmem:[%s3 + $0x20] sm:$0xff] %vm2881, %v2869
  %2887 = vst.msk [vmem:[%s3 + $0x28] sm:$0xff] %vm2881, %v2870
  %2888 = vst.msk [vmem:[%s3 + $0x30] sm:$0xff] %vm2881, %v2871
  %2889 = vst.msk [vmem:[%s3 + $0x38] sm:$0xff] %vm2881, %v2872
  %2890 = vst.msk [vmem:[%s3 + $0x40] sm:$0xff] %vm2881, %v2873
  %2891 = vst.msk [vmem:[%s3 + $0x48] sm:$0xff] %vm2881, %v2874
  %2892 = vst.msk [vmem:[%s3 + $0x50] sm:$0xff] %vm2881, %v2875
  %2893 = vst.msk [vmem:[%s3 + $0x58] sm:$0xff] %vm2881, %v2876
  %2894 = vst.msk [vmem:[%s3 + $0x60] sm:$0xff] %vm2881, %v2877
  %2895 = vst.msk [vmem:[%s3 + $0x68] sm:$0xff] %vm2881, %v2878
  %2896 = vst.msk [vmem:[%s3 + $0x70] sm:$0xff] %vm2881, %v2879
  %2897 = vst.msk [vmem:[%s3 + $0x78] sm:$0xff] %vm2881, %v2880
  // Predicated region
  $region14: #{tpu_custom_call.1} parent=0 // pred_check
    _
  $region15: #{tpu_custom_call.1} parent=0 // pred_check_branch
    %2899 = sbr.rel (0) target = $region17
  $region16: #{tpu_custom_call.1} parent=0 // pred_region
    _
  $region17: #{tpu_custom_call.1} parent=0 // pred_fallthru
    _
  // Predicated region
  $region18: #{tpu_custom_call.1} parent=0 // pred_check
    _
  $region19: #{tpu_custom_call.1} parent=0 // pred_check_branch
    %2901 = sbr.rel (0) target = $region21
  $region20: #{tpu_custom_call.1} parent=0 // pred_region
    _
  $region21: #{tpu_custom_call.1} parent=0 // pred_fallthru
    _

</llo_original>
